<compile_context>
chip_gen: v5e
topology: v5e:2x2
jax: 0.10.0
libtpu: 0.0.40
codegen_flags: <defaults>
</compile_context>

<pallas_src>
import functools

import jax
import jax.numpy as jnp
from jax import lax
from jax.experimental import pallas as pl
from jax.experimental.pallas import tpu as pltpu


def _round_up(x, m):
    return (x + m - 1) // m * m


# ----------------------------------------------------------------------------
# Pallas kernel: one LSTM layer, both directions fused, full in-kernel time
# loop.  Only the recurrent h @ W_hh matmul + gate elementwise math is on the
# serial critical path; the x-side projection is precomputed outside.
# ----------------------------------------------------------------------------
def _lstm_fused_kernel(*refs, hid_dim, seq_len, num_dirs, unroll):
    """Ref layout (positional):
         inputs : gx_d  (T, Bp, 4H) f32   for d in range(num_dirs)  (x@W_ih + b)
                  whh_d (H, 4H)     bf16  for d in range(num_dirs)
         outputs: out   (T, Bp, num_dirs*H) f32
                  h_n   (num_dirs, Bp, H)   f32
                  c_n   (num_dirs, Bp, H)   f32
         scratch: h_sc, c_sc (num_dirs, Bp, H) f32
    """
    gx_refs = refs[0:num_dirs]
    whh_refs = refs[num_dirs:2 * num_dirs]
    out_ref, hn_ref, cn_ref = refs[2 * num_dirs:2 * num_dirs + 3]
    h_sc, c_sc = refs[2 * num_dirs + 3:2 * num_dirs + 5]

    H = hid_dim
    T = seq_len

    h_sc[...] = jnp.zeros_like(h_sc)
    c_sc[...] = jnp.zeros_like(c_sc)

    # Recurrent weights loaded once, held resident (bf16 for the MXU).
    whh = [whh_refs[d][...] for d in range(num_dirs)]

    def step(t, carry):
        for d in range(num_dirs):
            # Forward direction walks t = 0..T-1, backward walks T-1..0.
            tt = t if d == 0 else T - 1 - t
            gx = gx_refs[d][tt]                        # (Bp, 4H) f32
            h = h_sc[d]                                # (Bp, H)  f32
            c = c_sc[d]                                # (Bp, H)  f32
            gates = gx + jnp.dot(h.astype(whh[d].dtype), whh[d],
                                 preferred_element_type=jnp.float32)
            # PyTorch gate order [i, f, g, o]; nonlinearities in f32 (EUP).
            i_g = jax.nn.sigmoid(gates[:, 0 * H:1 * H])
            f_g = jax.nn.sigmoid(gates[:, 1 * H:2 * H])
            g_g = jnp.tanh(gates[:, 2 * H:3 * H])
            o_g = jax.nn.sigmoid(gates[:, 3 * H:4 * H])
            c_new = f_g * c + i_g * g_g
            h_new = o_g * jnp.tanh(c_new)
            h_sc[d] = h_new
            c_sc[d] = c_new
            # fwd writes lanes [0:H], bwd writes lanes [H:2H] of the fused out.
            out_ref[pl.ds(tt, 1), :, d * H:(d + 1) * H] = h_new[None, :, :]
        return carry

    lax.fori_loop(0, T, step, 0, unroll=unroll)

    hn_ref[...] = h_sc[...]
    cn_ref[...] = c_sc[...]


def lstm_layer_fused(x_pad, dir_params, *, hid_dim):
    """One (bi)directional LSTM layer over the full (padded-batch) sequence.

    x_pad:      (T, Bp, in_dim) float32, Bp a multiple of 8.
    dir_params: list of (w_ih_t (in,4H) bf16, w_hh_t (H,4H) bf16, bias (4H,) f32)
    Returns:    out (T, Bp, num_dirs*H) f32, h_n (num_dirs, Bp, H), c_n (...).
    """
    T, Bp, _ = x_pad.shape
    H = hid_dim
    num_dirs = len(dir_params)

    # Hoisted input projection: one big MXU-friendly GEMM per direction,
    # no sequential dependence, done outside the recurrence kernel.
    x_bf = x_pad.astype(jnp.bfloat16)
    gx_list, whh_list = [], []
    for (w_ih_t, w_hh_t, bias) in dir_params:
        gx = jnp.einsum("tbe,ef->tbf", x_bf, w_ih_t,
                        preferred_element_type=jnp.float32) + bias
        gx_list.append(gx)                              # (T, Bp, 4H) f32
        whh_list.append(w_hh_t)                         # (H, 4H) bf16

    unroll = True if T <= 16 else 2
    kernel = functools.partial(
        _lstm_fused_kernel, hid_dim=H, seq_len=T, num_dirs=num_dirs,
        unroll=unroll)

    out_shape = (
        jax.ShapeDtypeStruct((T, Bp, num_dirs * H), jnp.float32),
        jax.ShapeDtypeStruct((num_dirs, Bp, H), jnp.float32),
        jax.ShapeDtypeStruct((num_dirs, Bp, H), jnp.float32),
    )

    # TODO(synk): at very large T, chunk the time axis instead of holding the
    # full (T, Bp, 4H) activation slab in VMEM.
    in_specs = (
        [pl.BlockSpec((T, Bp, 4 * H), lambda i: (0, 0, 0))
         for _ in range(num_dirs)]
        + [pl.BlockSpec((H, 4 * H), lambda i: (0, 0))
           for _ in range(num_dirs)]
    )
    out_specs = [
        pl.BlockSpec((T, Bp, num_dirs * H), lambda i: (0, 0, 0)),
        pl.BlockSpec((num_dirs, Bp, H), lambda i: (0, 0, 0)),
        pl.BlockSpec((num_dirs, Bp, H), lambda i: (0, 0, 0)),
    ]

    grid_spec = pltpu.PrefetchScalarGridSpec(
        num_scalar_prefetch=0,
        grid=(1,),
        in_specs=in_specs,
        out_specs=out_specs,
        scratch_shapes=[
            pltpu.VMEM((num_dirs, Bp, H), jnp.float32),   # h state
            pltpu.VMEM((num_dirs, Bp, H), jnp.float32),   # c state
        ],
    )

    out, h_n, c_n = pl.pallas_call(
        kernel,
        out_shape=out_shape,
        grid_spec=grid_spec,
        compiler_params=pltpu.CompilerParams(
            dimension_semantics=("arbitrary",)),   # sequential recurrence
    )(*gx_list, *whh_list)
    return out, h_n, c_n


# ----------------------------------------------------------------------------
# Encoder: embedding lookup (glue) + stacked fused (bi)directional LSTM layers.
# ----------------------------------------------------------------------------
def init_encoder_params(key, input_dim, emb_dim, hid_dim, n_layers, bidirectional):
    num_dirs = 2 if bidirectional else 1
    params = {}
    key, k_emb = jax.random.split(key)
    params["embedding"] = 0.1 * jax.random.normal(
        k_emb, (input_dim, emb_dim), dtype=jnp.float32)

    lstm = {}
    for l in range(n_layers):
        in_dim = emb_dim if l == 0 else hid_dim * num_dirs
        for d in range(num_dirs):
            key, k1, k2, k3, k4 = jax.random.split(key, 5)
            w_ih = 0.1 * jax.random.normal(k1, (4 * hid_dim, in_dim), jnp.float32)
            w_hh = 0.1 * jax.random.normal(k2, (4 * hid_dim, hid_dim), jnp.float32)
            b_ih = 0.1 * jax.random.normal(k3, (4 * hid_dim,), jnp.float32)
            b_hh = 0.1 * jax.random.normal(k4, (4 * hid_dim,), jnp.float32)
            lstm[(l, d)] = (
                jnp.transpose(w_ih).astype(jnp.bfloat16),   # (in, 4H) bf16
                jnp.transpose(w_hh).astype(jnp.bfloat16),   # (H, 4H)  bf16
                (b_ih + b_hh).astype(jnp.float32),          # (4H,)    f32
            )
    params["lstm"] = lstm
    return params


def encoder_forward(src, params, *, n_layers, hid_dim, bidirectional):
    """src: (T, B) int32 token ids.  Returns (outputs, hidden, cell)."""
    num_dirs = 2 if bidirectional else 1
    T, B = src.shape

    # Embedding lookup (glue).  Dropout is identity at inference.
    # TODO(synk): training-mode dropout (embedding + inter-layer) omitted.
    x = params["embedding"][src]                     # (T, B, emb_dim) f32

    # Pad batch to sublane granularity (8 for f32): pad rows never mix with
    # real rows (batch axis is independent) and are sliced off at the end.
    Bp = _round_up(max(B, 1), 8)
    if Bp != B:
        x = jnp.pad(x, ((0, 0), (0, Bp - B), (0, 0)))

    hs, cs = [], []
    for l in range(n_layers):
        dir_params = [params["lstm"][(l, d)] for d in range(num_dirs)]
        x, h_n, c_n = lstm_layer_fused(x, dir_params, hid_dim=hid_dim)
        for d in range(num_dirs):
            hs.append(h_n[d])
            cs.append(c_n[d])

    outputs = x[:, :B, :]                             # (T, B, num_dirs*H)
    hidden = jnp.stack(hs, axis=0)[:, :B, :]          # (n_layers*num_dirs, B, H)
    cell = jnp.stack(cs, axis=0)[:, :B, :]

    if bidirectional:
        hidden = hidden.reshape(n_layers, 2, B, hid_dim)
        hidden = jnp.transpose(hidden, (0, 2, 1, 3)).reshape(n_layers, B, 2 * hid_dim)
        cell = cell.reshape(n_layers, 2, B, hid_dim)
        cell = jnp.transpose(cell, (0, 2, 1, 3)).reshape(n_layers, B, 2 * hid_dim)

    return outputs, hidden, cell


if __name__ == "__main__":
    INPUT_DIM = 50      # vocab size
    EMB_DIM = 16
    HID_DIM = 32
    N_LAYERS = 2
    BIDIRECTIONAL = True
    SEQ_LEN = 8
    BATCH = 2

    key = jax.random.PRNGKey(0)
    key, k_src, k_params = jax.random.split(key, 3)

    src = jax.random.randint(k_src, (SEQ_LEN, BATCH), 0, INPUT_DIM, dtype=jnp.int32)
    params = init_encoder_params(
        k_params, INPUT_DIM, EMB_DIM, HID_DIM, N_LAYERS, BIDIRECTIONAL)

    outputs, hidden, cell = encoder_forward(
        src, params, n_layers=N_LAYERS, hid_dim=HID_DIM,
        bidirectional=BIDIRECTIONAL)

    jax.block_until_ready((outputs, hidden, cell))

    num_dirs = 2 if BIDIRECTIONAL else 1
    assert outputs.shape == (SEQ_LEN, BATCH, num_dirs * HID_DIM)
    assert hidden.shape == (N_LAYERS, BATCH, num_dirs * HID_DIM)
    assert cell.shape == (N_LAYERS, BATCH, num_dirs * HID_DIM)
    assert jnp.all(jnp.isfinite(outputs))
    assert jnp.all(jnp.isfinite(hidden))
    assert jnp.all(jnp.isfinite(cell))

    print("KERNEL_OK")
</pallas_src>

<mosaic_0001>
module attributes {stable_mosaic.version = 11 : i64} {
  func.func @_lstm_fused_kernel(%arg0: i32, %arg1: memref<8x8x128xf32, #tpu.memory_space<vmem>>, %arg2: memref<8x8x128xf32, #tpu.memory_space<vmem>>, %arg3: memref<32x128xbf16, #tpu.memory_space<vmem>>, %arg4: memref<32x128xbf16, #tpu.memory_space<vmem>>, %arg5: memref<8x8x64xf32, #tpu.memory_space<vmem>>, %arg6: memref<2x8x32xf32, #tpu.memory_space<vmem>>, %arg7: memref<2x8x32xf32, #tpu.memory_space<vmem>>, %arg8: memref<2x8x32xf32, #tpu.memory_space<vmem>>, %arg9: memref<2x8x32xf32, #tpu.memory_space<vmem>>) attributes {dimension_semantics = [#tpu.dimension_semantics<arbitrary>], iteration_bounds = array<i64: 1>, scalar_prefetch = 0 : i64, scratch_operands = 2 : i64, tpu.core_type = #tpu.core_type<tc>, window_params = [{pipeline_mode = #tpu.pipeline_mode<synchronous>, transform_indices = @transform_0, window_bounds = array<i64: 8, 8, 128>}, {pipeline_mode = #tpu.pipeline_mode<synchronous>, transform_indices = @transform_1, window_bounds = array<i64: 8, 8, 128>}, {pipeline_mode = #tpu.pipeline_mode<synchronous>, transform_indices = @transform_2, window_bounds = array<i64: 32, 128>}, {pipeline_mode = #tpu.pipeline_mode<synchronous>, transform_indices = @transform_3, window_bounds = array<i64: 32, 128>}, {pipeline_mode = #tpu.pipeline_mode<synchronous>, transform_indices = @transform_4, window_bounds = array<i64: 8, 8, 64>}, {pipeline_mode = #tpu.pipeline_mode<synchronous>, transform_indices = @transform_5, window_bounds = array<i64: 2, 8, 32>}, {pipeline_mode = #tpu.pipeline_mode<synchronous>, transform_indices = @transform_6, window_bounds = array<i64: 2, 8, 32>}]} {
    %cst = arith.constant 0.000000e+00 : f32
    %0 = vector.broadcast %cst : f32 to vector<2x8x32xf32>
    %c0 = arith.constant 0 : index
    %c0_0 = arith.constant 0 : index
    %c0_1 = arith.constant 0 : index
    %1 = vector.load %arg8[%c0, %c0_0, %c0_1] : memref<2x8x32xf32, #tpu.memory_space<vmem>>, vector<2x8x32xf32>
    tpu.vector_store %arg8[%c0, %c0_0, %c0_1], %0 {strides = array<i32>} : memref<2x8x32xf32, #tpu.memory_space<vmem>>, vector<2x8x32xf32>,
    %cst_2 = arith.constant 0.000000e+00 : f32
    %2 = vector.broadcast %cst_2 : f32 to vector<2x8x32xf32>
    %c0_3 = arith.constant 0 : index
    %c0_4 = arith.constant 0 : index
    %c0_5 = arith.constant 0 : index
    %3 = vector.load %arg9[%c0_3, %c0_4, %c0_5] : memref<2x8x32xf32, #tpu.memory_space<vmem>>, vector<2x8x32xf32>
    tpu.vector_store %arg9[%c0_3, %c0_4, %c0_5], %2 {strides = array<i32>} : memref<2x8x32xf32, #tpu.memory_space<vmem>>, vector<2x8x32xf32>,
    %c0_6 = arith.constant 0 : index
    %c0_7 = arith.constant 0 : index
    %4 = vector.load %arg3[%c0_6, %c0_7] : memref<32x128xbf16, #tpu.memory_space<vmem>>, vector<32x128xbf16>
    %c0_8 = arith.constant 0 : index
    %c0_9 = arith.constant 0 : index
    %5 = vector.load %arg4[%c0_8, %c0_9] : memref<32x128xbf16, #tpu.memory_space<vmem>>, vector<32x128xbf16>
    %c0_i32 = arith.constant 0 : i32
    %6 = arith.index_cast %c0_i32 : i32 to index
    %c0_10 = arith.constant 0 : index
    %c0_11 = arith.constant 0 : index
    %7 = vector.load %arg1[%6, %c0_10, %c0_11] : memref<8x8x128xf32, #tpu.memory_space<vmem>>, vector<1x8x128xf32>
    %8 = vector.shape_cast %7 : vector<1x8x128xf32> to vector<8x128xf32>
    %c0_12 = arith.constant 0 : index
    %c0_13 = arith.constant 0 : index
    %c0_14 = arith.constant 0 : index
    %9 = vector.load %arg8[%c0_12, %c0_13, %c0_14] : memref<2x8x32xf32, #tpu.memory_space<vmem>>, vector<1x8x32xf32>
    %10 = vector.shape_cast %9 : vector<1x8x32xf32> to vector<8x32xf32>
    %c0_15 = arith.constant 0 : index
    %c0_16 = arith.constant 0 : index
    %c0_17 = arith.constant 0 : index
    %11 = vector.load %arg9[%c0_15, %c0_16, %c0_17] : memref<2x8x32xf32, #tpu.memory_space<vmem>>, vector<1x8x32xf32>
    %12 = vector.shape_cast %11 : vector<1x8x32xf32> to vector<8x32xf32>
    %13 = arith.truncf %10 : vector<8x32xf32> to vector<8x32xbf16>
    %cst_18 = arith.constant dense<0.000000e+00> : vector<8x128xf32>
    %14 = tpu.matmul %13, %4, %cst_18 {dimension_numbers = #tpu.dot_dimension_numbers<[1], [0], [0], [1], [0, 0, 1, 1], [], []>} : vector<8x32xbf16>, vector<32x128xbf16>, vector<8x128xf32> -> vector<8x128xf32>
    %15 = arith.addf %8, %14 : vector<8x128xf32>
    %16 = vector.extract_strided_slice %15 {offsets = [0, 0], sizes = [8, 32], strides = [1, 1]} : vector<8x128xf32> to vector<8x32xf32>
    %17 = arith.negf %16 : vector<8x32xf32>
    %18 = math.exp %17 : vector<8x32xf32>
    %cst_19 = arith.constant 1.000000e+00 : f32
    %19 = vector.broadcast %cst_19 : f32 to vector<8x32xf32>
    %20 = arith.addf %19, %18 : vector<8x32xf32>
    %21 = arith.divf %19, %20 : vector<8x32xf32>
    %22 = vector.extract_strided_slice %15 {offsets = [0, 32], sizes = [8, 32], strides = [1, 1]} : vector<8x128xf32> to vector<8x32xf32>
    %23 = arith.negf %22 : vector<8x32xf32>
    %24 = math.exp %23 : vector<8x32xf32>
    %cst_20 = arith.constant 1.000000e+00 : f32
    %25 = vector.broadcast %cst_20 : f32 to vector<8x32xf32>
    %26 = arith.addf %25, %24 : vector<8x32xf32>
    %27 = arith.divf %25, %26 : vector<8x32xf32>
    %28 = vector.extract_strided_slice %15 {offsets = [0, 64], sizes = [8, 32], strides = [1, 1]} : vector<8x128xf32> to vector<8x32xf32>
    %29 = math.tanh %28 : vector<8x32xf32>
    %30 = vector.extract_strided_slice %15 {offsets = [0, 96], sizes = [8, 32], strides = [1, 1]} : vector<8x128xf32> to vector<8x32xf32>
    %31 = arith.negf %30 : vector<8x32xf32>
    %32 = math.exp %31 : vector<8x32xf32>
    %cst_21 = arith.constant 1.000000e+00 : f32
    %33 = vector.broadcast %cst_21 : f32 to vector<8x32xf32>
    %34 = arith.addf %33, %32 : vector<8x32xf32>
    %35 = arith.divf %33, %34 : vector<8x32xf32>
    %36 = arith.mulf %27, %12 : vector<8x32xf32>
    %37 = arith.mulf %21, %29 : vector<8x32xf32>
    %38 = arith.addf %36, %37 : vector<8x32xf32>
    %39 = math.tanh %38 : vector<8x32xf32>
    %40 = arith.mulf %35, %39 : vector<8x32xf32>
    %c0_22 = arith.constant 0 : index
    %c0_23 = arith.constant 0 : index
    %c0_24 = arith.constant 0 : index
    %41 = vector.load %arg8[%c0_22, %c0_23, %c0_24] : memref<2x8x32xf32, #tpu.memory_space<vmem>>, vector<1x8x32xf32>
    %42 = vector.shape_cast %41 : vector<1x8x32xf32> to vector<8x32xf32>
    %43 = vector.shape_cast %40 : vector<8x32xf32> to vector<1x8x32xf32>
    tpu.vector_store %arg8[%c0_22, %c0_23, %c0_24], %43 {strides = array<i32>} : memref<2x8x32xf32, #tpu.memory_space<vmem>>, vector<1x8x32xf32>,
    %c0_25 = arith.constant 0 : index
    %c0_26 = arith.constant 0 : index
    %c0_27 = arith.constant 0 : index
    %44 = vector.load %arg9[%c0_25, %c0_26, %c0_27] : memref<2x8x32xf32, #tpu.memory_space<vmem>>, vector<1x8x32xf32>
    %45 = vector.shape_cast %44 : vector<1x8x32xf32> to vector<8x32xf32>
    %46 = vector.shape_cast %38 : vector<8x32xf32> to vector<1x8x32xf32>
    tpu.vector_store %arg9[%c0_25, %c0_26, %c0_27], %46 {strides = array<i32>} : memref<2x8x32xf32, #tpu.memory_space<vmem>>, vector<1x8x32xf32>,
    %47 = vector.shape_cast %40 : vector<8x32xf32> to vector<1x8x32xf32>
    %48 = arith.index_cast %c0_i32 : i32 to index
    %c0_28 = arith.constant 0 : index
    %c0_29 = arith.constant 0 : index
    %49 = vector.load %arg5[%48, %c0_28, %c0_29] : memref<8x8x64xf32, #tpu.memory_space<vmem>>, vector<1x8x32xf32>
    tpu.vector_store %arg5[%48, %c0_28, %c0_29], %47 {strides = array<i32>} : memref<8x8x64xf32, #tpu.memory_space<vmem>>, vector<1x8x32xf32>,
    %c7_i32 = arith.constant 7 : i32
    %50 = arith.subi %c7_i32, %c0_i32 : i32
    %51 = arith.index_cast %50 : i32 to index
    %c0_30 = arith.constant 0 : index
    %c0_31 = arith.constant 0 : index
    %52 = vector.load %arg2[%51, %c0_30, %c0_31] : memref<8x8x128xf32, #tpu.memory_space<vmem>>, vector<1x8x128xf32>
    %53 = vector.shape_cast %52 : vector<1x8x128xf32> to vector<8x128xf32>
    %c1 = arith.constant 1 : index
    %c0_32 = arith.constant 0 : index
    %c0_33 = arith.constant 0 : index
    %54 = vector.load %arg8[%c1, %c0_32, %c0_33] : memref<2x8x32xf32, #tpu.memory_space<vmem>>, vector<1x8x32xf32>
    %55 = vector.shape_cast %54 : vector<1x8x32xf32> to vector<8x32xf32>
    %c1_34 = arith.constant 1 : index
    %c0_35 = arith.constant 0 : index
    %c0_36 = arith.constant 0 : index
    %56 = vector.load %arg9[%c1_34, %c0_35, %c0_36] : memref<2x8x32xf32, #tpu.memory_space<vmem>>, vector<1x8x32xf32>
    %57 = vector.shape_cast %56 : vector<1x8x32xf32> to vector<8x32xf32>
    %58 = arith.truncf %55 : vector<8x32xf32> to vector<8x32xbf16>
    %cst_37 = arith.constant dense<0.000000e+00> : vector<8x128xf32>
    %59 = tpu.matmul %58, %5, %cst_37 {dimension_numbers = #tpu.dot_dimension_numbers<[1], [0], [0], [1], [0, 0, 1, 1], [], []>} : vector<8x32xbf16>, vector<32x128xbf16>, vector<8x128xf32> -> vector<8x128xf32>
    %60 = arith.addf %53, %59 : vector<8x128xf32>
    %61 = vector.extract_strided_slice %60 {offsets = [0, 0], sizes = [8, 32], strides = [1, 1]} : vector<8x128xf32> to vector<8x32xf32>
    %62 = arith.negf %61 : vector<8x32xf32>
    %63 = math.exp %62 : vector<8x32xf32>
    %cst_38 = arith.constant 1.000000e+00 : f32
    %64 = vector.broadcast %cst_38 : f32 to vector<8x32xf32>
    %65 = arith.addf %64, %63 : vector<8x32xf32>
    %66 = arith.divf %64, %65 : vector<8x32xf32>
    %67 = vector.extract_strided_slice %60 {offsets = [0, 32], sizes = [8, 32], strides = [1, 1]} : vector<8x128xf32> to vector<8x32xf32>
    %68 = arith.negf %67 : vector<8x32xf32>
    %69 = math.exp %68 : vector<8x32xf32>
    %cst_39 = arith.constant 1.000000e+00 : f32
    %70 = vector.broadcast %cst_39 : f32 to vector<8x32xf32>
    %71 = arith.addf %70, %69 : vector<8x32xf32>
    %72 = arith.divf %70, %71 : vector<8x32xf32>
    %73 = vector.extract_strided_slice %60 {offsets = [0, 64], sizes = [8, 32], strides = [1, 1]} : vector<8x128xf32> to vector<8x32xf32>
    %74 = math.tanh %73 : vector<8x32xf32>
    %75 = vector.extract_strided_slice %60 {offsets = [0, 96], sizes = [8, 32], strides = [1, 1]} : vector<8x128xf32> to vector<8x32xf32>
    %76 = arith.negf %75 : vector<8x32xf32>
    %77 = math.exp %76 : vector<8x32xf32>
    %cst_40 = arith.constant 1.000000e+00 : f32
    %78 = vector.broadcast %cst_40 : f32 to vector<8x32xf32>
    %79 = arith.addf %78, %77 : vector<8x32xf32>
    %80 = arith.divf %78, %79 : vector<8x32xf32>
    %81 = arith.mulf %72, %57 : vector<8x32xf32>
    %82 = arith.mulf %66, %74 : vector<8x32xf32>
    %83 = arith.addf %81, %82 : vector<8x32xf32>
    %84 = math.tanh %83 : vector<8x32xf32>
    %85 = arith.mulf %80, %84 : vector<8x32xf32>
    %c1_41 = arith.constant 1 : index
    %c0_42 = arith.constant 0 : index
    %c0_43 = arith.constant 0 : index
    %86 = vector.load %arg8[%c1_41, %c0_42, %c0_43] : memref<2x8x32xf32, #tpu.memory_space<vmem>>, vector<1x8x32xf32>
    %87 = vector.shape_cast %86 : vector<1x8x32xf32> to vector<8x32xf32>
    %88 = vector.shape_cast %85 : vector<8x32xf32> to vector<1x8x32xf32>
    tpu.vector_store %arg8[%c1_41, %c0_42, %c0_43], %88 {strides = array<i32>} : memref<2x8x32xf32, #tpu.memory_space<vmem>>, vector<1x8x32xf32>,
    %c1_44 = arith.constant 1 : index
    %c0_45 = arith.constant 0 : index
    %c0_46 = arith.constant 0 : index
    %89 = vector.load %arg9[%c1_44, %c0_45, %c0_46] : memref<2x8x32xf32, #tpu.memory_space<vmem>>, vector<1x8x32xf32>
    %90 = vector.shape_cast %89 : vector<1x8x32xf32> to vector<8x32xf32>
    %91 = vector.shape_cast %83 : vector<8x32xf32> to vector<1x8x32xf32>
    tpu.vector_store %arg9[%c1_44, %c0_45, %c0_46], %91 {strides = array<i32>} : memref<2x8x32xf32, #tpu.memory_space<vmem>>, vector<1x8x32xf32>,
    %92 = vector.shape_cast %85 : vector<8x32xf32> to vector<1x8x32xf32>
    %93 = arith.index_cast %50 : i32 to index
    %c0_47 = arith.constant 0 : index
    %c32 = arith.constant 32 : index
    %94 = vector.load %arg5[%93, %c0_47, %c32] : memref<8x8x64xf32, #tpu.memory_space<vmem>>, vector<1x8x32xf32>
    tpu.vector_store %arg5[%93, %c0_47, %c32], %92 {strides = array<i32>} : memref<8x8x64xf32, #tpu.memory_space<vmem>>, vector<1x8x32xf32>,
    %c1_i32 = arith.constant 1 : i32
    %95 = arith.index_cast %c1_i32 : i32 to index
    %c0_48 = arith.constant 0 : index
    %c0_49 = arith.constant 0 : index
    %96 = vector.load %arg1[%95, %c0_48, %c0_49] : memref<8x8x128xf32, #tpu.memory_space<vmem>>, vector<1x8x128xf32>
    %97 = vector.shape_cast %96 : vector<1x8x128xf32> to vector<8x128xf32>
    %c0_50 = arith.constant 0 : index
    %c0_51 = arith.constant 0 : index
    %c0_52 = arith.constant 0 : index
    %98 = vector.load %arg8[%c0_50, %c0_51, %c0_52] : memref<2x8x32xf32, #tpu.memory_space<vmem>>, vector<1x8x32xf32>
    %99 = vector.shape_cast %98 : vector<1x8x32xf32> to vector<8x32xf32>
    %c0_53 = arith.constant 0 : index
    %c0_54 = arith.constant 0 : index
    %c0_55 = arith.constant 0 : index
    %100 = vector.load %arg9[%c0_53, %c0_54, %c0_55] : memref<2x8x32xf32, #tpu.memory_space<vmem>>, vector<1x8x32xf32>
    %101 = vector.shape_cast %100 : vector<1x8x32xf32> to vector<8x32xf32>
    %102 = arith.truncf %99 : vector<8x32xf32> to vector<8x32xbf16>
    %cst_56 = arith.constant dense<0.000000e+00> : vector<8x128xf32>
    %103 = tpu.matmul %102, %4, %cst_56 {dimension_numbers = #tpu.dot_dimension_numbers<[1], [0], [0], [1], [0, 0, 1, 1], [], []>} : vector<8x32xbf16>, vector<32x128xbf16>, vector<8x128xf32> -> vector<8x128xf32>
    %104 = arith.addf %97, %103 : vector<8x128xf32>
    %105 = vector.extract_strided_slice %104 {offsets = [0, 0], sizes = [8, 32], strides = [1, 1]} : vector<8x128xf32> to vector<8x32xf32>
    %106 = arith.negf %105 : vector<8x32xf32>
    %107 = math.exp %106 : vector<8x32xf32>
    %cst_57 = arith.constant 1.000000e+00 : f32
    %108 = vector.broadcast %cst_57 : f32 to vector<8x32xf32>
    %109 = arith.addf %108, %107 : vector<8x32xf32>
    %110 = arith.divf %108, %109 : vector<8x32xf32>
    %111 = vector.extract_strided_slice %104 {offsets = [0, 32], sizes = [8, 32], strides = [1, 1]} : vector<8x128xf32> to vector<8x32xf32>
    %112 = arith.negf %111 : vector<8x32xf32>
    %113 = math.exp %112 : vector<8x32xf32>
    %cst_58 = arith.constant 1.000000e+00 : f32
    %114 = vector.broadcast %cst_58 : f32 to vector<8x32xf32>
    %115 = arith.addf %114, %113 : vector<8x32xf32>
    %116 = arith.divf %114, %115 : vector<8x32xf32>
    %117 = vector.extract_strided_slice %104 {offsets = [0, 64], sizes = [8, 32], strides = [1, 1]} : vector<8x128xf32> to vector<8x32xf32>
    %118 = math.tanh %117 : vector<8x32xf32>
    %119 = vector.extract_strided_slice %104 {offsets = [0, 96], sizes = [8, 32], strides = [1, 1]} : vector<8x128xf32> to vector<8x32xf32>
    %120 = arith.negf %119 : vector<8x32xf32>
    %121 = math.exp %120 : vector<8x32xf32>
    %cst_59 = arith.constant 1.000000e+00 : f32
    %122 = vector.broadcast %cst_59 : f32 to vector<8x32xf32>
    %123 = arith.addf %122, %121 : vector<8x32xf32>
    %124 = arith.divf %122, %123 : vector<8x32xf32>
    %125 = arith.mulf %116, %101 : vector<8x32xf32>
    %126 = arith.mulf %110, %118 : vector<8x32xf32>
    %127 = arith.addf %125, %126 : vector<8x32xf32>
    %128 = math.tanh %127 : vector<8x32xf32>
    %129 = arith.mulf %124, %128 : vector<8x32xf32>
    %c0_60 = arith.constant 0 : index
    %c0_61 = arith.constant 0 : index
    %c0_62 = arith.constant 0 : index
    %130 = vector.load %arg8[%c0_60, %c0_61, %c0_62] : memref<2x8x32xf32, #tpu.memory_space<vmem>>, vector<1x8x32xf32>
    %131 = vector.shape_cast %130 : vector<1x8x32xf32> to vector<8x32xf32>
    %132 = vector.shape_cast %129 : vector<8x32xf32> to vector<1x8x32xf32>
    tpu.vector_store %arg8[%c0_60, %c0_61, %c0_62], %132 {strides = array<i32>} : memref<2x8x32xf32, #tpu.memory_space<vmem>>, vector<1x8x32xf32>,
    %c0_63 = arith.constant 0 : index
    %c0_64 = arith.constant 0 : index
    %c0_65 = arith.constant 0 : index
    %133 = vector.load %arg9[%c0_63, %c0_64, %c0_65] : memref<2x8x32xf32, #tpu.memory_space<vmem>>, vector<1x8x32xf32>
    %134 = vector.shape_cast %133 : vector<1x8x32xf32> to vector<8x32xf32>
    %135 = vector.shape_cast %127 : vector<8x32xf32> to vector<1x8x32xf32>
    tpu.vector_store %arg9[%c0_63, %c0_64, %c0_65], %135 {strides = array<i32>} : memref<2x8x32xf32, #tpu.memory_space<vmem>>, vector<1x8x32xf32>,
    %136 = vector.shape_cast %129 : vector<8x32xf32> to vector<1x8x32xf32>
    %137 = arith.index_cast %c1_i32 : i32 to index
    %c0_66 = arith.constant 0 : index
    %c0_67 = arith.constant 0 : index
    %138 = vector.load %arg5[%137, %c0_66, %c0_67] : memref<8x8x64xf32, #tpu.memory_space<vmem>>, vector<1x8x32xf32>
    tpu.vector_store %arg5[%137, %c0_66, %c0_67], %136 {strides = array<i32>} : memref<8x8x64xf32, #tpu.memory_space<vmem>>, vector<1x8x32xf32>,
    %c7_i32_68 = arith.constant 7 : i32
    %139 = arith.subi %c7_i32_68, %c1_i32 : i32
    %140 = arith.index_cast %139 : i32 to index
    %c0_69 = arith.constant 0 : index
    %c0_70 = arith.constant 0 : index
    %141 = vector.load %arg2[%140, %c0_69, %c0_70] : memref<8x8x128xf32, #tpu.memory_space<vmem>>, vector<1x8x128xf32>
    %142 = vector.shape_cast %141 : vector<1x8x128xf32> to vector<8x128xf32>
    %c1_71 = arith.constant 1 : index
    %c0_72 = arith.constant 0 : index
    %c0_73 = arith.constant 0 : index
    %143 = vector.load %arg8[%c1_71, %c0_72, %c0_73] : memref<2x8x32xf32, #tpu.memory_space<vmem>>, vector<1x8x32xf32>
    %144 = vector.shape_cast %143 : vector<1x8x32xf32> to vector<8x32xf32>
    %c1_74 = arith.constant 1 : index
    %c0_75 = arith.constant 0 : index
    %c0_76 = arith.constant 0 : index
    %145 = vector.load %arg9[%c1_74, %c0_75, %c0_76] : memref<2x8x32xf32, #tpu.memory_space<vmem>>, vector<1x8x32xf32>
    %146 = vector.shape_cast %145 : vector<1x8x32xf32> to vector<8x32xf32>
    %147 = arith.truncf %144 : vector<8x32xf32> to vector<8x32xbf16>
    %cst_77 = arith.constant dense<0.000000e+00> : vector<8x128xf32>
    %148 = tpu.matmul %147, %5, %cst_77 {dimension_numbers = #tpu.dot_dimension_numbers<[1], [0], [0], [1], [0, 0, 1, 1], [], []>} : vector<8x32xbf16>, vector<32x128xbf16>, vector<8x128xf32> -> vector<8x128xf32>
    %149 = arith.addf %142, %148 : vector<8x128xf32>
    %150 = vector.extract_strided_slice %149 {offsets = [0, 0], sizes = [8, 32], strides = [1, 1]} : vector<8x128xf32> to vector<8x32xf32>
    %151 = arith.negf %150 : vector<8x32xf32>
    %152 = math.exp %151 : vector<8x32xf32>
    %cst_78 = arith.constant 1.000000e+00 : f32
    %153 = vector.broadcast %cst_78 : f32 to vector<8x32xf32>
    %154 = arith.addf %153, %152 : vector<8x32xf32>
    %155 = arith.divf %153, %154 : vector<8x32xf32>
    %156 = vector.extract_strided_slice %149 {offsets = [0, 32], sizes = [8, 32], strides = [1, 1]} : vector<8x128xf32> to vector<8x32xf32>
    %157 = arith.negf %156 : vector<8x32xf32>
    %158 = math.exp %157 : vector<8x32xf32>
    %cst_79 = arith.constant 1.000000e+00 : f32
    %159 = vector.broadcast %cst_79 : f32 to vector<8x32xf32>
    %160 = arith.addf %159, %158 : vector<8x32xf32>
    %161 = arith.divf %159, %160 : vector<8x32xf32>
    %162 = vector.extract_strided_slice %149 {offsets = [0, 64], sizes = [8, 32], strides = [1, 1]} : vector<8x128xf32> to vector<8x32xf32>
    %163 = math.tanh %162 : vector<8x32xf32>
    %164 = vector.extract_strided_slice %149 {offsets = [0, 96], sizes = [8, 32], strides = [1, 1]} : vector<8x128xf32> to vector<8x32xf32>
    %165 = arith.negf %164 : vector<8x32xf32>
    %166 = math.exp %165 : vector<8x32xf32>
    %cst_80 = arith.constant 1.000000e+00 : f32
    %167 = vector.broadcast %cst_80 : f32 to vector<8x32xf32>
    %168 = arith.addf %167, %166 : vector<8x32xf32>
    %169 = arith.divf %167, %168 : vector<8x32xf32>
    %170 = arith.mulf %161, %146 : vector<8x32xf32>
    %171 = arith.mulf %155, %163 : vector<8x32xf32>
    %172 = arith.addf %170, %171 : vector<8x32xf32>
    %173 = math.tanh %172 : vector<8x32xf32>
    %174 = arith.mulf %169, %173 : vector<8x32xf32>
    %c1_81 = arith.constant 1 : index
    %c0_82 = arith.constant 0 : index
    %c0_83 = arith.constant 0 : index
    %175 = vector.load %arg8[%c1_81, %c0_82, %c0_83] : memref<2x8x32xf32, #tpu.memory_space<vmem>>, vector<1x8x32xf32>
    %176 = vector.shape_cast %175 : vector<1x8x32xf32> to vector<8x32xf32>
    %177 = vector.shape_cast %174 : vector<8x32xf32> to vector<1x8x32xf32>
    tpu.vector_store %arg8[%c1_81, %c0_82, %c0_83], %177 {strides = array<i32>} : memref<2x8x32xf32, #tpu.memory_space<vmem>>, vector<1x8x32xf32>,
    %c1_84 = arith.constant 1 : index
    %c0_85 = arith.constant 0 : index
    %c0_86 = arith.constant 0 : index
    %178 = vector.load %arg9[%c1_84, %c0_85, %c0_86] : memref<2x8x32xf32, #tpu.memory_space<vmem>>, vector<1x8x32xf32>
    %179 = vector.shape_cast %178 : vector<1x8x32xf32> to vector<8x32xf32>
    %180 = vector.shape_cast %172 : vector<8x32xf32> to vector<1x8x32xf32>
    tpu.vector_store %arg9[%c1_84, %c0_85, %c0_86], %180 {strides = array<i32>} : memref<2x8x32xf32, #tpu.memory_space<vmem>>, vector<1x8x32xf32>,
    %181 = vector.shape_cast %174 : vector<8x32xf32> to vector<1x8x32xf32>
    %182 = arith.index_cast %139 : i32 to index
    %c0_87 = arith.constant 0 : index
    %c32_88 = arith.constant 32 : index
    %183 = vector.load %arg5[%182, %c0_87, %c32_88] : memref<8x8x64xf32, #tpu.memory_space<vmem>>, vector<1x8x32xf32>
    tpu.vector_store %arg5[%182, %c0_87, %c32_88], %181 {strides = array<i32>} : memref<8x8x64xf32, #tpu.memory_space<vmem>>, vector<1x8x32xf32>,
    %c2_i32 = arith.constant 2 : i32
    %184 = arith.index_cast %c2_i32 : i32 to index
    %c0_89 = arith.constant 0 : index
    %c0_90 = arith.constant 0 : index
    %185 = vector.load %arg1[%184, %c0_89, %c0_90] : memref<8x8x128xf32, #tpu.memory_space<vmem>>, vector<1x8x128xf32>
    %186 = vector.shape_cast %185 : vector<1x8x128xf32> to vector<8x128xf32>
    %c0_91 = arith.constant 0 : index
    %c0_92 = arith.constant 0 : index
    %c0_93 = arith.constant 0 : index
    %187 = vector.load %arg8[%c0_91, %c0_92, %c0_93] : memref<2x8x32xf32, #tpu.memory_space<vmem>>, vector<1x8x32xf32>
    %188 = vector.shape_cast %187 : vector<1x8x32xf32> to vector<8x32xf32>
    %c0_94 = arith.constant 0 : index
    %c0_95 = arith.constant 0 : index
    %c0_96 = arith.constant 0 : index
    %189 = vector.load %arg9[%c0_94, %c0_95, %c0_96] : memref<2x8x32xf32, #tpu.memory_space<vmem>>, vector<1x8x32xf32>
    %190 = vector.shape_cast %189 : vector<1x8x32xf32> to vector<8x32xf32>
    %191 = arith.truncf %188 : vector<8x32xf32> to vector<8x32xbf16>
    %cst_97 = arith.constant dense<0.000000e+00> : vector<8x128xf32>
    %192 = tpu.matmul %191, %4, %cst_97 {dimension_numbers = #tpu.dot_dimension_numbers<[1], [0], [0], [1], [0, 0, 1, 1], [], []>} : vector<8x32xbf16>, vector<32x128xbf16>, vector<8x128xf32> -> vector<8x128xf32>
    %193 = arith.addf %186, %192 : vector<8x128xf32>
    %194 = vector.extract_strided_slice %193 {offsets = [0, 0], sizes = [8, 32], strides = [1, 1]} : vector<8x128xf32> to vector<8x32xf32>
    %195 = arith.negf %194 : vector<8x32xf32>
    %196 = math.exp %195 : vector<8x32xf32>
    %cst_98 = arith.constant 1.000000e+00 : f32
    %197 = vector.broadcast %cst_98 : f32 to vector<8x32xf32>
    %198 = arith.addf %197, %196 : vector<8x32xf32>
    %199 = arith.divf %197, %198 : vector<8x32xf32>
    %200 = vector.extract_strided_slice %193 {offsets = [0, 32], sizes = [8, 32], strides = [1, 1]} : vector<8x128xf32> to vector<8x32xf32>
    %201 = arith.negf %200 : vector<8x32xf32>
    %202 = math.exp %201 : vector<8x32xf32>
    %cst_99 = arith.constant 1.000000e+00 : f32
    %203 = vector.broadcast %cst_99 : f32 to vector<8x32xf32>
    %204 = arith.addf %203, %202 : vector<8x32xf32>
    %205 = arith.divf %203, %204 : vector<8x32xf32>
    %206 = vector.extract_strided_slice %193 {offsets = [0, 64], sizes = [8, 32], strides = [1, 1]} : vector<8x128xf32> to vector<8x32xf32>
    %207 = math.tanh %206 : vector<8x32xf32>
    %208 = vector.extract_strided_slice %193 {offsets = [0, 96], sizes = [8, 32], strides = [1, 1]} : vector<8x128xf32> to vector<8x32xf32>
    %209 = arith.negf %208 : vector<8x32xf32>
    %210 = math.exp %209 : vector<8x32xf32>
    %cst_100 = arith.constant 1.000000e+00 : f32
    %211 = vector.broadcast %cst_100 : f32 to vector<8x32xf32>
    %212 = arith.addf %211, %210 : vector<8x32xf32>
    %213 = arith.divf %211, %212 : vector<8x32xf32>
    %214 = arith.mulf %205, %190 : vector<8x32xf32>
    %215 = arith.mulf %199, %207 : vector<8x32xf32>
    %216 = arith.addf %214, %215 : vector<8x32xf32>
    %217 = math.tanh %216 : vector<8x32xf32>
    %218 = arith.mulf %213, %217 : vector<8x32xf32>
    %c0_101 = arith.constant 0 : index
    %c0_102 = arith.constant 0 : index
    %c0_103 = arith.constant 0 : index
    %219 = vector.load %arg8[%c0_101, %c0_102, %c0_103] : memref<2x8x32xf32, #tpu.memory_space<vmem>>, vector<1x8x32xf32>
    %220 = vector.shape_cast %219 : vector<1x8x32xf32> to vector<8x32xf32>
    %221 = vector.shape_cast %218 : vector<8x32xf32> to vector<1x8x32xf32>
    tpu.vector_store %arg8[%c0_101, %c0_102, %c0_103], %221 {strides = array<i32>} : memref<2x8x32xf32, #tpu.memory_space<vmem>>, vector<1x8x32xf32>,
    %c0_104 = arith.constant 0 : index
    %c0_105 = arith.constant 0 : index
    %c0_106 = arith.constant 0 : index
    %222 = vector.load %arg9[%c0_104, %c0_105, %c0_106] : memref<2x8x32xf32, #tpu.memory_space<vmem>>, vector<1x8x32xf32>
    %223 = vector.shape_cast %222 : vector<1x8x32xf32> to vector<8x32xf32>
    %224 = vector.shape_cast %216 : vector<8x32xf32> to vector<1x8x32xf32>
    tpu.vector_store %arg9[%c0_104, %c0_105, %c0_106], %224 {strides = array<i32>} : memref<2x8x32xf32, #tpu.memory_space<vmem>>, vector<1x8x32xf32>,
    %225 = vector.shape_cast %218 : vector<8x32xf32> to vector<1x8x32xf32>
    %226 = arith.index_cast %c2_i32 : i32 to index
    %c0_107 = arith.constant 0 : index
    %c0_108 = arith.constant 0 : index
    %227 = vector.load %arg5[%226, %c0_107, %c0_108] : memref<8x8x64xf32, #tpu.memory_space<vmem>>, vector<1x8x32xf32>
    tpu.vector_store %arg5[%226, %c0_107, %c0_108], %225 {strides = array<i32>} : memref<8x8x64xf32, #tpu.memory_space<vmem>>, vector<1x8x32xf32>,
    %c7_i32_109 = arith.constant 7 : i32
    %228 = arith.subi %c7_i32_109, %c2_i32 : i32
    %229 = arith.index_cast %228 : i32 to index
    %c0_110 = arith.constant 0 : index
    %c0_111 = arith.constant 0 : index
    %230 = vector.load %arg2[%229, %c0_110, %c0_111] : memref<8x8x128xf32, #tpu.memory_space<vmem>>, vector<1x8x128xf32>
    %231 = vector.shape_cast %230 : vector<1x8x128xf32> to vector<8x128xf32>
    %c1_112 = arith.constant 1 : index
    %c0_113 = arith.constant 0 : index
    %c0_114 = arith.constant 0 : index
    %232 = vector.load %arg8[%c1_112, %c0_113, %c0_114] : memref<2x8x32xf32, #tpu.memory_space<vmem>>, vector<1x8x32xf32>
    %233 = vector.shape_cast %232 : vector<1x8x32xf32> to vector<8x32xf32>
    %c1_115 = arith.constant 1 : index
    %c0_116 = arith.constant 0 : index
    %c0_117 = arith.constant 0 : index
    %234 = vector.load %arg9[%c1_115, %c0_116, %c0_117] : memref<2x8x32xf32, #tpu.memory_space<vmem>>, vector<1x8x32xf32>
    %235 = vector.shape_cast %234 : vector<1x8x32xf32> to vector<8x32xf32>
    %236 = arith.truncf %233 : vector<8x32xf32> to vector<8x32xbf16>
    %cst_118 = arith.constant dense<0.000000e+00> : vector<8x128xf32>
    %237 = tpu.matmul %236, %5, %cst_118 {dimension_numbers = #tpu.dot_dimension_numbers<[1], [0], [0], [1], [0, 0, 1, 1], [], []>} : vector<8x32xbf16>, vector<32x128xbf16>, vector<8x128xf32> -> vector<8x128xf32>
    %238 = arith.addf %231, %237 : vector<8x128xf32>
    %239 = vector.extract_strided_slice %238 {offsets = [0, 0], sizes = [8, 32], strides = [1, 1]} : vector<8x128xf32> to vector<8x32xf32>
    %240 = arith.negf %239 : vector<8x32xf32>
    %241 = math.exp %240 : vector<8x32xf32>
    %cst_119 = arith.constant 1.000000e+00 : f32
    %242 = vector.broadcast %cst_119 : f32 to vector<8x32xf32>
    %243 = arith.addf %242, %241 : vector<8x32xf32>
    %244 = arith.divf %242, %243 : vector<8x32xf32>
    %245 = vector.extract_strided_slice %238 {offsets = [0, 32], sizes = [8, 32], strides = [1, 1]} : vector<8x128xf32> to vector<8x32xf32>
    %246 = arith.negf %245 : vector<8x32xf32>
    %247 = math.exp %246 : vector<8x32xf32>
    %cst_120 = arith.constant 1.000000e+00 : f32
    %248 = vector.broadcast %cst_120 : f32 to vector<8x32xf32>
    %249 = arith.addf %248, %247 : vector<8x32xf32>
    %250 = arith.divf %248, %249 : vector<8x32xf32>
    %251 = vector.extract_strided_slice %238 {offsets = [0, 64], sizes = [8, 32], strides = [1, 1]} : vector<8x128xf32> to vector<8x32xf32>
    %252 = math.tanh %251 : vector<8x32xf32>
    %253 = vector.extract_strided_slice %238 {offsets = [0, 96], sizes = [8, 32], strides = [1, 1]} : vector<8x128xf32> to vector<8x32xf32>
    %254 = arith.negf %253 : vector<8x32xf32>
    %255 = math.exp %254 : vector<8x32xf32>
    %cst_121 = arith.constant 1.000000e+00 : f32
    %256 = vector.broadcast %cst_121 : f32 to vector<8x32xf32>
    %257 = arith.addf %256, %255 : vector<8x32xf32>
    %258 = arith.divf %256, %257 : vector<8x32xf32>
    %259 = arith.mulf %250, %235 : vector<8x32xf32>
    %260 = arith.mulf %244, %252 : vector<8x32xf32>
    %261 = arith.addf %259, %260 : vector<8x32xf32>
    %262 = math.tanh %261 : vector<8x32xf32>
    %263 = arith.mulf %258, %262 : vector<8x32xf32>
    %c1_122 = arith.constant 1 : index
    %c0_123 = arith.constant 0 : index
    %c0_124 = arith.constant 0 : index
    %264 = vector.load %arg8[%c1_122, %c0_123, %c0_124] : memref<2x8x32xf32, #tpu.memory_space<vmem>>, vector<1x8x32xf32>
    %265 = vector.shape_cast %264 : vector<1x8x32xf32> to vector<8x32xf32>
    %266 = vector.shape_cast %263 : vector<8x32xf32> to vector<1x8x32xf32>
    tpu.vector_store %arg8[%c1_122, %c0_123, %c0_124], %266 {strides = array<i32>} : memref<2x8x32xf32, #tpu.memory_space<vmem>>, vector<1x8x32xf32>,
    %c1_125 = arith.constant 1 : index
    %c0_126 = arith.constant 0 : index
    %c0_127 = arith.constant 0 : index
    %267 = vector.load %arg9[%c1_125, %c0_126, %c0_127] : memref<2x8x32xf32, #tpu.memory_space<vmem>>, vector<1x8x32xf32>
    %268 = vector.shape_cast %267 : vector<1x8x32xf32> to vector<8x32xf32>
    %269 = vector.shape_cast %261 : vector<8x32xf32> to vector<1x8x32xf32>
    tpu.vector_store %arg9[%c1_125, %c0_126, %c0_127], %269 {strides = array<i32>} : memref<2x8x32xf32, #tpu.memory_space<vmem>>, vector<1x8x32xf32>,
    %270 = vector.shape_cast %263 : vector<8x32xf32> to vector<1x8x32xf32>
    %271 = arith.index_cast %228 : i32 to index
    %c0_128 = arith.constant 0 : index
    %c32_129 = arith.constant 32 : index
    %272 = vector.load %arg5[%271, %c0_128, %c32_129] : memref<8x8x64xf32, #tpu.memory_space<vmem>>, vector<1x8x32xf32>
    tpu.vector_store %arg5[%271, %c0_128, %c32_129], %270 {strides = array<i32>} : memref<8x8x64xf32, #tpu.memory_space<vmem>>, vector<1x8x32xf32>,
    %c3_i32 = arith.constant 3 : i32
    %273 = arith.index_cast %c3_i32 : i32 to index
    %c0_130 = arith.constant 0 : index
    %c0_131 = arith.constant 0 : index
    %274 = vector.load %arg1[%273, %c0_130, %c0_131] : memref<8x8x128xf32, #tpu.memory_space<vmem>>, vector<1x8x128xf32>
    %275 = vector.shape_cast %274 : vector<1x8x128xf32> to vector<8x128xf32>
    %c0_132 = arith.constant 0 : index
    %c0_133 = arith.constant 0 : index
    %c0_134 = arith.constant 0 : index
    %276 = vector.load %arg8[%c0_132, %c0_133, %c0_134] : memref<2x8x32xf32, #tpu.memory_space<vmem>>, vector<1x8x32xf32>
    %277 = vector.shape_cast %276 : vector<1x8x32xf32> to vector<8x32xf32>
    %c0_135 = arith.constant 0 : index
    %c0_136 = arith.constant 0 : index
    %c0_137 = arith.constant 0 : index
    %278 = vector.load %arg9[%c0_135, %c0_136, %c0_137] : memref<2x8x32xf32, #tpu.memory_space<vmem>>, vector<1x8x32xf32>
    %279 = vector.shape_cast %278 : vector<1x8x32xf32> to vector<8x32xf32>
    %280 = arith.truncf %277 : vector<8x32xf32> to vector<8x32xbf16>
    %cst_138 = arith.constant dense<0.000000e+00> : vector<8x128xf32>
    %281 = tpu.matmul %280, %4, %cst_138 {dimension_numbers = #tpu.dot_dimension_numbers<[1], [0], [0], [1], [0, 0, 1, 1], [], []>} : vector<8x32xbf16>, vector<32x128xbf16>, vector<8x128xf32> -> vector<8x128xf32>
    %282 = arith.addf %275, %281 : vector<8x128xf32>
    %283 = vector.extract_strided_slice %282 {offsets = [0, 0], sizes = [8, 32], strides = [1, 1]} : vector<8x128xf32> to vector<8x32xf32>
    %284 = arith.negf %283 : vector<8x32xf32>
    %285 = math.exp %284 : vector<8x32xf32>
    %cst_139 = arith.constant 1.000000e+00 : f32
    %286 = vector.broadcast %cst_139 : f32 to vector<8x32xf32>
    %287 = arith.addf %286, %285 : vector<8x32xf32>
    %288 = arith.divf %286, %287 : vector<8x32xf32>
    %289 = vector.extract_strided_slice %282 {offsets = [0, 32], sizes = [8, 32], strides = [1, 1]} : vector<8x128xf32> to vector<8x32xf32>
    %290 = arith.negf %289 : vector<8x32xf32>
    %291 = math.exp %290 : vector<8x32xf32>
    %cst_140 = arith.constant 1.000000e+00 : f32
    %292 = vector.broadcast %cst_140 : f32 to vector<8x32xf32>
    %293 = arith.addf %292, %291 : vector<8x32xf32>
    %294 = arith.divf %292, %293 : vector<8x32xf32>
    %295 = vector.extract_strided_slice %282 {offsets = [0, 64], sizes = [8, 32], strides = [1, 1]} : vector<8x128xf32> to vector<8x32xf32>
    %296 = math.tanh %295 : vector<8x32xf32>
    %297 = vector.extract_strided_slice %282 {offsets = [0, 96], sizes = [8, 32], strides = [1, 1]} : vector<8x128xf32> to vector<8x32xf32>
    %298 = arith.negf %297 : vector<8x32xf32>
    %299 = math.exp %298 : vector<8x32xf32>
    %cst_141 = arith.constant 1.000000e+00 : f32
    %300 = vector.broadcast %cst_141 : f32 to vector<8x32xf32>
    %301 = arith.addf %300, %299 : vector<8x32xf32>
    %302 = arith.divf %300, %301 : vector<8x32xf32>
    %303 = arith.mulf %294, %279 : vector<8x32xf32>
    %304 = arith.mulf %288, %296 : vector<8x32xf32>
    %305 = arith.addf %303, %304 : vector<8x32xf32>
    %306 = math.tanh %305 : vector<8x32xf32>
    %307 = arith.mulf %302, %306 : vector<8x32xf32>
    %c0_142 = arith.constant 0 : index
    %c0_143 = arith.constant 0 : index
    %c0_144 = arith.constant 0 : index
    %308 = vector.load %arg8[%c0_142, %c0_143, %c0_144] : memref<2x8x32xf32, #tpu.memory_space<vmem>>, vector<1x8x32xf32>
    %309 = vector.shape_cast %308 : vector<1x8x32xf32> to vector<8x32xf32>
    %310 = vector.shape_cast %307 : vector<8x32xf32> to vector<1x8x32xf32>
    tpu.vector_store %arg8[%c0_142, %c0_143, %c0_144], %310 {strides = array<i32>} : memref<2x8x32xf32, #tpu.memory_space<vmem>>, vector<1x8x32xf32>,
    %c0_145 = arith.constant 0 : index
    %c0_146 = arith.constant 0 : index
    %c0_147 = arith.constant 0 : index
    %311 = vector.load %arg9[%c0_145, %c0_146, %c0_147] : memref<2x8x32xf32, #tpu.memory_space<vmem>>, vector<1x8x32xf32>
    %312 = vector.shape_cast %311 : vector<1x8x32xf32> to vector<8x32xf32>
    %313 = vector.shape_cast %305 : vector<8x32xf32> to vector<1x8x32xf32>
    tpu.vector_store %arg9[%c0_145, %c0_146, %c0_147], %313 {strides = array<i32>} : memref<2x8x32xf32, #tpu.memory_space<vmem>>, vector<1x8x32xf32>,
    %314 = vector.shape_cast %307 : vector<8x32xf32> to vector<1x8x32xf32>
    %315 = arith.index_cast %c3_i32 : i32 to index
    %c0_148 = arith.constant 0 : index
    %c0_149 = arith.constant 0 : index
    %316 = vector.load %arg5[%315, %c0_148, %c0_149] : memref<8x8x64xf32, #tpu.memory_space<vmem>>, vector<1x8x32xf32>
    tpu.vector_store %arg5[%315, %c0_148, %c0_149], %314 {strides = array<i32>} : memref<8x8x64xf32, #tpu.memory_space<vmem>>, vector<1x8x32xf32>,
    %c7_i32_150 = arith.constant 7 : i32
    %317 = arith.subi %c7_i32_150, %c3_i32 : i32
    %318 = arith.index_cast %317 : i32 to index
    %c0_151 = arith.constant 0 : index
    %c0_152 = arith.constant 0 : index
    %319 = vector.load %arg2[%318, %c0_151, %c0_152] : memref<8x8x128xf32, #tpu.memory_space<vmem>>, vector<1x8x128xf32>
    %320 = vector.shape_cast %319 : vector<1x8x128xf32> to vector<8x128xf32>
    %c1_153 = arith.constant 1 : index
    %c0_154 = arith.constant 0 : index
    %c0_155 = arith.constant 0 : index
    %321 = vector.load %arg8[%c1_153, %c0_154, %c0_155] : memref<2x8x32xf32, #tpu.memory_space<vmem>>, vector<1x8x32xf32>
    %322 = vector.shape_cast %321 : vector<1x8x32xf32> to vector<8x32xf32>
    %c1_156 = arith.constant 1 : index
    %c0_157 = arith.constant 0 : index
    %c0_158 = arith.constant 0 : index
    %323 = vector.load %arg9[%c1_156, %c0_157, %c0_158] : memref<2x8x32xf32, #tpu.memory_space<vmem>>, vector<1x8x32xf32>
    %324 = vector.shape_cast %323 : vector<1x8x32xf32> to vector<8x32xf32>
    %325 = arith.truncf %322 : vector<8x32xf32> to vector<8x32xbf16>
    %cst_159 = arith.constant dense<0.000000e+00> : vector<8x128xf32>
    %326 = tpu.matmul %325, %5, %cst_159 {dimension_numbers = #tpu.dot_dimension_numbers<[1], [0], [0], [1], [0, 0, 1, 1], [], []>} : vector<8x32xbf16>, vector<32x128xbf16>, vector<8x128xf32> -> vector<8x128xf32>
    %327 = arith.addf %320, %326 : vector<8x128xf32>
    %328 = vector.extract_strided_slice %327 {offsets = [0, 0], sizes = [8, 32], strides = [1, 1]} : vector<8x128xf32> to vector<8x32xf32>
    %329 = arith.negf %328 : vector<8x32xf32>
    %330 = math.exp %329 : vector<8x32xf32>
    %cst_160 = arith.constant 1.000000e+00 : f32
    %331 = vector.broadcast %cst_160 : f32 to vector<8x32xf32>
    %332 = arith.addf %331, %330 : vector<8x32xf32>
    %333 = arith.divf %331, %332 : vector<8x32xf32>
    %334 = vector.extract_strided_slice %327 {offsets = [0, 32], sizes = [8, 32], strides = [1, 1]} : vector<8x128xf32> to vector<8x32xf32>
    %335 = arith.negf %334 : vector<8x32xf32>
    %336 = math.exp %335 : vector<8x32xf32>
    %cst_161 = arith.constant 1.000000e+00 : f32
    %337 = vector.broadcast %cst_161 : f32 to vector<8x32xf32>
    %338 = arith.addf %337, %336 : vector<8x32xf32>
    %339 = arith.divf %337, %338 : vector<8x32xf32>
    %340 = vector.extract_strided_slice %327 {offsets = [0, 64], sizes = [8, 32], strides = [1, 1]} : vector<8x128xf32> to vector<8x32xf32>
    %341 = math.tanh %340 : vector<8x32xf32>
    %342 = vector.extract_strided_slice %327 {offsets = [0, 96], sizes = [8, 32], strides = [1, 1]} : vector<8x128xf32> to vector<8x32xf32>
    %343 = arith.negf %342 : vector<8x32xf32>
    %344 = math.exp %343 : vector<8x32xf32>
    %cst_162 = arith.constant 1.000000e+00 : f32
    %345 = vector.broadcast %cst_162 : f32 to vector<8x32xf32>
    %346 = arith.addf %345, %344 : vector<8x32xf32>
    %347 = arith.divf %345, %346 : vector<8x32xf32>
    %348 = arith.mulf %339, %324 : vector<8x32xf32>
    %349 = arith.mulf %333, %341 : vector<8x32xf32>
    %350 = arith.addf %348, %349 : vector<8x32xf32>
    %351 = math.tanh %350 : vector<8x32xf32>
    %352 = arith.mulf %347, %351 : vector<8x32xf32>
    %c1_163 = arith.constant 1 : index
    %c0_164 = arith.constant 0 : index
    %c0_165 = arith.constant 0 : index
    %353 = vector.load %arg8[%c1_163, %c0_164, %c0_165] : memref<2x8x32xf32, #tpu.memory_space<vmem>>, vector<1x8x32xf32>
    %354 = vector.shape_cast %353 : vector<1x8x32xf32> to vector<8x32xf32>
    %355 = vector.shape_cast %352 : vector<8x32xf32> to vector<1x8x32xf32>
    tpu.vector_store %arg8[%c1_163, %c0_164, %c0_165], %355 {strides = array<i32>} : memref<2x8x32xf32, #tpu.memory_space<vmem>>, vector<1x8x32xf32>,
    %c1_166 = arith.constant 1 : index
    %c0_167 = arith.constant 0 : index
    %c0_168 = arith.constant 0 : index
    %356 = vector.load %arg9[%c1_166, %c0_167, %c0_168] : memref<2x8x32xf32, #tpu.memory_space<vmem>>, vector<1x8x32xf32>
    %357 = vector.shape_cast %356 : vector<1x8x32xf32> to vector<8x32xf32>
    %358 = vector.shape_cast %350 : vector<8x32xf32> to vector<1x8x32xf32>
    tpu.vector_store %arg9[%c1_166, %c0_167, %c0_168], %358 {strides = array<i32>} : memref<2x8x32xf32, #tpu.memory_space<vmem>>, vector<1x8x32xf32>,
    %359 = vector.shape_cast %352 : vector<8x32xf32> to vector<1x8x32xf32>
    %360 = arith.index_cast %317 : i32 to index
    %c0_169 = arith.constant 0 : index
    %c32_170 = arith.constant 32 : index
    %361 = vector.load %arg5[%360, %c0_169, %c32_170] : memref<8x8x64xf32, #tpu.memory_space<vmem>>, vector<1x8x32xf32>
    tpu.vector_store %arg5[%360, %c0_169, %c32_170], %359 {strides = array<i32>} : memref<8x8x64xf32, #tpu.memory_space<vmem>>, vector<1x8x32xf32>,
    %c4_i32 = arith.constant 4 : i32
    %362 = arith.index_cast %c4_i32 : i32 to index
    %c0_171 = arith.constant 0 : index
    %c0_172 = arith.constant 0 : index
    %363 = vector.load %arg1[%362, %c0_171, %c0_172] : memref<8x8x128xf32, #tpu.memory_space<vmem>>, vector<1x8x128xf32>
    %364 = vector.shape_cast %363 : vector<1x8x128xf32> to vector<8x128xf32>
    %c0_173 = arith.constant 0 : index
    %c0_174 = arith.constant 0 : index
    %c0_175 = arith.constant 0 : index
    %365 = vector.load %arg8[%c0_173, %c0_174, %c0_175] : memref<2x8x32xf32, #tpu.memory_space<vmem>>, vector<1x8x32xf32>
    %366 = vector.shape_cast %365 : vector<1x8x32xf32> to vector<8x32xf32>
    %c0_176 = arith.constant 0 : index
    %c0_177 = arith.constant 0 : index
    %c0_178 = arith.constant 0 : index
    %367 = vector.load %arg9[%c0_176, %c0_177, %c0_178] : memref<2x8x32xf32, #tpu.memory_space<vmem>>, vector<1x8x32xf32>
    %368 = vector.shape_cast %367 : vector<1x8x32xf32> to vector<8x32xf32>
    %369 = arith.truncf %366 : vector<8x32xf32> to vector<8x32xbf16>
    %cst_179 = arith.constant dense<0.000000e+00> : vector<8x128xf32>
    %370 = tpu.matmul %369, %4, %cst_179 {dimension_numbers = #tpu.dot_dimension_numbers<[1], [0], [0], [1], [0, 0, 1, 1], [], []>} : vector<8x32xbf16>, vector<32x128xbf16>, vector<8x128xf32> -> vector<8x128xf32>
    %371 = arith.addf %364, %370 : vector<8x128xf32>
    %372 = vector.extract_strided_slice %371 {offsets = [0, 0], sizes = [8, 32], strides = [1, 1]} : vector<8x128xf32> to vector<8x32xf32>
    %373 = arith.negf %372 : vector<8x32xf32>
    %374 = math.exp %373 : vector<8x32xf32>
    %cst_180 = arith.constant 1.000000e+00 : f32
    %375 = vector.broadcast %cst_180 : f32 to vector<8x32xf32>
    %376 = arith.addf %375, %374 : vector<8x32xf32>
    %377 = arith.divf %375, %376 : vector<8x32xf32>
    %378 = vector.extract_strided_slice %371 {offsets = [0, 32], sizes = [8, 32], strides = [1, 1]} : vector<8x128xf32> to vector<8x32xf32>
    %379 = arith.negf %378 : vector<8x32xf32>
    %380 = math.exp %379 : vector<8x32xf32>
    %cst_181 = arith.constant 1.000000e+00 : f32
    %381 = vector.broadcast %cst_181 : f32 to vector<8x32xf32>
    %382 = arith.addf %381, %380 : vector<8x32xf32>
    %383 = arith.divf %381, %382 : vector<8x32xf32>
    %384 = vector.extract_strided_slice %371 {offsets = [0, 64], sizes = [8, 32], strides = [1, 1]} : vector<8x128xf32> to vector<8x32xf32>
    %385 = math.tanh %384 : vector<8x32xf32>
    %386 = vector.extract_strided_slice %371 {offsets = [0, 96], sizes = [8, 32], strides = [1, 1]} : vector<8x128xf32> to vector<8x32xf32>
    %387 = arith.negf %386 : vector<8x32xf32>
    %388 = math.exp %387 : vector<8x32xf32>
    %cst_182 = arith.constant 1.000000e+00 : f32
    %389 = vector.broadcast %cst_182 : f32 to vector<8x32xf32>
    %390 = arith.addf %389, %388 : vector<8x32xf32>
    %391 = arith.divf %389, %390 : vector<8x32xf32>
    %392 = arith.mulf %383, %368 : vector<8x32xf32>
    %393 = arith.mulf %377, %385 : vector<8x32xf32>
    %394 = arith.addf %392, %393 : vector<8x32xf32>
    %395 = math.tanh %394 : vector<8x32xf32>
    %396 = arith.mulf %391, %395 : vector<8x32xf32>
    %c0_183 = arith.constant 0 : index
    %c0_184 = arith.constant 0 : index
    %c0_185 = arith.constant 0 : index
    %397 = vector.load %arg8[%c0_183, %c0_184, %c0_185] : memref<2x8x32xf32, #tpu.memory_space<vmem>>, vector<1x8x32xf32>
    %398 = vector.shape_cast %397 : vector<1x8x32xf32> to vector<8x32xf32>
    %399 = vector.shape_cast %396 : vector<8x32xf32> to vector<1x8x32xf32>
    tpu.vector_store %arg8[%c0_183, %c0_184, %c0_185], %399 {strides = array<i32>} : memref<2x8x32xf32, #tpu.memory_space<vmem>>, vector<1x8x32xf32>,
    %c0_186 = arith.constant 0 : index
    %c0_187 = arith.constant 0 : index
    %c0_188 = arith.constant 0 : index
    %400 = vector.load %arg9[%c0_186, %c0_187, %c0_188] : memref<2x8x32xf32, #tpu.memory_space<vmem>>, vector<1x8x32xf32>
    %401 = vector.shape_cast %400 : vector<1x8x32xf32> to vector<8x32xf32>
    %402 = vector.shape_cast %394 : vector<8x32xf32> to vector<1x8x32xf32>
    tpu.vector_store %arg9[%c0_186, %c0_187, %c0_188], %402 {strides = array<i32>} : memref<2x8x32xf32, #tpu.memory_space<vmem>>, vector<1x8x32xf32>,
    %403 = vector.shape_cast %396 : vector<8x32xf32> to vector<1x8x32xf32>
    %404 = arith.index_cast %c4_i32 : i32 to index
    %c0_189 = arith.constant 0 : index
    %c0_190 = arith.constant 0 : index
    %405 = vector.load %arg5[%404, %c0_189, %c0_190] : memref<8x8x64xf32, #tpu.memory_space<vmem>>, vector<1x8x32xf32>
    tpu.vector_store %arg5[%404, %c0_189, %c0_190], %403 {strides = array<i32>} : memref<8x8x64xf32, #tpu.memory_space<vmem>>, vector<1x8x32xf32>,
    %c7_i32_191 = arith.constant 7 : i32
    %406 = arith.subi %c7_i32_191, %c4_i32 : i32
    %407 = arith.index_cast %406 : i32 to index
    %c0_192 = arith.constant 0 : index
    %c0_193 = arith.constant 0 : index
    %408 = vector.load %arg2[%407, %c0_192, %c0_193] : memref<8x8x128xf32, #tpu.memory_space<vmem>>, vector<1x8x128xf32>
    %409 = vector.shape_cast %408 : vector<1x8x128xf32> to vector<8x128xf32>
    %c1_194 = arith.constant 1 : index
    %c0_195 = arith.constant 0 : index
    %c0_196 = arith.constant 0 : index
    %410 = vector.load %arg8[%c1_194, %c0_195, %c0_196] : memref<2x8x32xf32, #tpu.memory_space<vmem>>, vector<1x8x32xf32>
    %411 = vector.shape_cast %410 : vector<1x8x32xf32> to vector<8x32xf32>
    %c1_197 = arith.constant 1 : index
    %c0_198 = arith.constant 0 : index
    %c0_199 = arith.constant 0 : index
    %412 = vector.load %arg9[%c1_197, %c0_198, %c0_199] : memref<2x8x32xf32, #tpu.memory_space<vmem>>, vector<1x8x32xf32>
    %413 = vector.shape_cast %412 : vector<1x8x32xf32> to vector<8x32xf32>
    %414 = arith.truncf %411 : vector<8x32xf32> to vector<8x32xbf16>
    %cst_200 = arith.constant dense<0.000000e+00> : vector<8x128xf32>
    %415 = tpu.matmul %414, %5, %cst_200 {dimension_numbers = #tpu.dot_dimension_numbers<[1], [0], [0], [1], [0, 0, 1, 1], [], []>} : vector<8x32xbf16>, vector<32x128xbf16>, vector<8x128xf32> -> vector<8x128xf32>
    %416 = arith.addf %409, %415 : vector<8x128xf32>
    %417 = vector.extract_strided_slice %416 {offsets = [0, 0], sizes = [8, 32], strides = [1, 1]} : vector<8x128xf32> to vector<8x32xf32>
    %418 = arith.negf %417 : vector<8x32xf32>
    %419 = math.exp %418 : vector<8x32xf32>
    %cst_201 = arith.constant 1.000000e+00 : f32
    %420 = vector.broadcast %cst_201 : f32 to vector<8x32xf32>
    %421 = arith.addf %420, %419 : vector<8x32xf32>
    %422 = arith.divf %420, %421 : vector<8x32xf32>
    %423 = vector.extract_strided_slice %416 {offsets = [0, 32], sizes = [8, 32], strides = [1, 1]} : vector<8x128xf32> to vector<8x32xf32>
    %424 = arith.negf %423 : vector<8x32xf32>
    %425 = math.exp %424 : vector<8x32xf32>
    %cst_202 = arith.constant 1.000000e+00 : f32
    %426 = vector.broadcast %cst_202 : f32 to vector<8x32xf32>
    %427 = arith.addf %426, %425 : vector<8x32xf32>
    %428 = arith.divf %426, %427 : vector<8x32xf32>
    %429 = vector.extract_strided_slice %416 {offsets = [0, 64], sizes = [8, 32], strides = [1, 1]} : vector<8x128xf32> to vector<8x32xf32>
    %430 = math.tanh %429 : vector<8x32xf32>
    %431 = vector.extract_strided_slice %416 {offsets = [0, 96], sizes = [8, 32], strides = [1, 1]} : vector<8x128xf32> to vector<8x32xf32>
    %432 = arith.negf %431 : vector<8x32xf32>
    %433 = math.exp %432 : vector<8x32xf32>
    %cst_203 = arith.constant 1.000000e+00 : f32
    %434 = vector.broadcast %cst_203 : f32 to vector<8x32xf32>
    %435 = arith.addf %434, %433 : vector<8x32xf32>
    %436 = arith.divf %434, %435 : vector<8x32xf32>
    %437 = arith.mulf %428, %413 : vector<8x32xf32>
    %438 = arith.mulf %422, %430 : vector<8x32xf32>
    %439 = arith.addf %437, %438 : vector<8x32xf32>
    %440 = math.tanh %439 : vector<8x32xf32>
    %441 = arith.mulf %436, %440 : vector<8x32xf32>
    %c1_204 = arith.constant 1 : index
    %c0_205 = arith.constant 0 : index
    %c0_206 = arith.constant 0 : index
    %442 = vector.load %arg8[%c1_204, %c0_205, %c0_206] : memref<2x8x32xf32, #tpu.memory_space<vmem>>, vector<1x8x32xf32>
    %443 = vector.shape_cast %442 : vector<1x8x32xf32> to vector<8x32xf32>
    %444 = vector.shape_cast %441 : vector<8x32xf32> to vector<1x8x32xf32>
    tpu.vector_store %arg8[%c1_204, %c0_205, %c0_206], %444 {strides = array<i32>} : memref<2x8x32xf32, #tpu.memory_space<vmem>>, vector<1x8x32xf32>,
    %c1_207 = arith.constant 1 : index
    %c0_208 = arith.constant 0 : index
    %c0_209 = arith.constant 0 : index
    %445 = vector.load %arg9[%c1_207, %c0_208, %c0_209] : memref<2x8x32xf32, #tpu.memory_space<vmem>>, vector<1x8x32xf32>
    %446 = vector.shape_cast %445 : vector<1x8x32xf32> to vector<8x32xf32>
    %447 = vector.shape_cast %439 : vector<8x32xf32> to vector<1x8x32xf32>
    tpu.vector_store %arg9[%c1_207, %c0_208, %c0_209], %447 {strides = array<i32>} : memref<2x8x32xf32, #tpu.memory_space<vmem>>, vector<1x8x32xf32>,
    %448 = vector.shape_cast %441 : vector<8x32xf32> to vector<1x8x32xf32>
    %449 = arith.index_cast %406 : i32 to index
    %c0_210 = arith.constant 0 : index
    %c32_211 = arith.constant 32 : index
    %450 = vector.load %arg5[%449, %c0_210, %c32_211] : memref<8x8x64xf32, #tpu.memory_space<vmem>>, vector<1x8x32xf32>
    tpu.vector_store %arg5[%449, %c0_210, %c32_211], %448 {strides = array<i32>} : memref<8x8x64xf32, #tpu.memory_space<vmem>>, vector<1x8x32xf32>,
    %c5_i32 = arith.constant 5 : i32
    %451 = arith.index_cast %c5_i32 : i32 to index
    %c0_212 = arith.constant 0 : index
    %c0_213 = arith.constant 0 : index
    %452 = vector.load %arg1[%451, %c0_212, %c0_213] : memref<8x8x128xf32, #tpu.memory_space<vmem>>, vector<1x8x128xf32>
    %453 = vector.shape_cast %452 : vector<1x8x128xf32> to vector<8x128xf32>
    %c0_214 = arith.constant 0 : index
    %c0_215 = arith.constant 0 : index
    %c0_216 = arith.constant 0 : index
    %454 = vector.load %arg8[%c0_214, %c0_215, %c0_216] : memref<2x8x32xf32, #tpu.memory_space<vmem>>, vector<1x8x32xf32>
    %455 = vector.shape_cast %454 : vector<1x8x32xf32> to vector<8x32xf32>
    %c0_217 = arith.constant 0 : index
    %c0_218 = arith.constant 0 : index
    %c0_219 = arith.constant 0 : index
    %456 = vector.load %arg9[%c0_217, %c0_218, %c0_219] : memref<2x8x32xf32, #tpu.memory_space<vmem>>, vector<1x8x32xf32>
    %457 = vector.shape_cast %456 : vector<1x8x32xf32> to vector<8x32xf32>
    %458 = arith.truncf %455 : vector<8x32xf32> to vector<8x32xbf16>
    %cst_220 = arith.constant dense<0.000000e+00> : vector<8x128xf32>
    %459 = tpu.matmul %458, %4, %cst_220 {dimension_numbers = #tpu.dot_dimension_numbers<[1], [0], [0], [1], [0, 0, 1, 1], [], []>} : vector<8x32xbf16>, vector<32x128xbf16>, vector<8x128xf32> -> vector<8x128xf32>
    %460 = arith.addf %453, %459 : vector<8x128xf32>
    %461 = vector.extract_strided_slice %460 {offsets = [0, 0], sizes = [8, 32], strides = [1, 1]} : vector<8x128xf32> to vector<8x32xf32>
    %462 = arith.negf %461 : vector<8x32xf32>
    %463 = math.exp %462 : vector<8x32xf32>
    %cst_221 = arith.constant 1.000000e+00 : f32
    %464 = vector.broadcast %cst_221 : f32 to vector<8x32xf32>
    %465 = arith.addf %464, %463 : vector<8x32xf32>
    %466 = arith.divf %464, %465 : vector<8x32xf32>
    %467 = vector.extract_strided_slice %460 {offsets = [0, 32], sizes = [8, 32], strides = [1, 1]} : vector<8x128xf32> to vector<8x32xf32>
    %468 = arith.negf %467 : vector<8x32xf32>
    %469 = math.exp %468 : vector<8x32xf32>
    %cst_222 = arith.constant 1.000000e+00 : f32
    %470 = vector.broadcast %cst_222 : f32 to vector<8x32xf32>
    %471 = arith.addf %470, %469 : vector<8x32xf32>
    %472 = arith.divf %470, %471 : vector<8x32xf32>
    %473 = vector.extract_strided_slice %460 {offsets = [0, 64], sizes = [8, 32], strides = [1, 1]} : vector<8x128xf32> to vector<8x32xf32>
    %474 = math.tanh %473 : vector<8x32xf32>
    %475 = vector.extract_strided_slice %460 {offsets = [0, 96], sizes = [8, 32], strides = [1, 1]} : vector<8x128xf32> to vector<8x32xf32>
    %476 = arith.negf %475 : vector<8x32xf32>
    %477 = math.exp %476 : vector<8x32xf32>
    %cst_223 = arith.constant 1.000000e+00 : f32
    %478 = vector.broadcast %cst_223 : f32 to vector<8x32xf32>
    %479 = arith.addf %478, %477 : vector<8x32xf32>
    %480 = arith.divf %478, %479 : vector<8x32xf32>
    %481 = arith.mulf %472, %457 : vector<8x32xf32>
    %482 = arith.mulf %466, %474 : vector<8x32xf32>
    %483 = arith.addf %481, %482 : vector<8x32xf32>
    %484 = math.tanh %483 : vector<8x32xf32>
    %485 = arith.mulf %480, %484 : vector<8x32xf32>
    %c0_224 = arith.constant 0 : index
    %c0_225 = arith.constant 0 : index
    %c0_226 = arith.constant 0 : index
    %486 = vector.load %arg8[%c0_224, %c0_225, %c0_226] : memref<2x8x32xf32, #tpu.memory_space<vmem>>, vector<1x8x32xf32>
    %487 = vector.shape_cast %486 : vector<1x8x32xf32> to vector<8x32xf32>
    %488 = vector.shape_cast %485 : vector<8x32xf32> to vector<1x8x32xf32>
    tpu.vector_store %arg8[%c0_224, %c0_225, %c0_226], %488 {strides = array<i32>} : memref<2x8x32xf32, #tpu.memory_space<vmem>>, vector<1x8x32xf32>,
    %c0_227 = arith.constant 0 : index
    %c0_228 = arith.constant 0 : index
    %c0_229 = arith.constant 0 : index
    %489 = vector.load %arg9[%c0_227, %c0_228, %c0_229] : memref<2x8x32xf32, #tpu.memory_space<vmem>>, vector<1x8x32xf32>
    %490 = vector.shape_cast %489 : vector<1x8x32xf32> to vector<8x32xf32>
    %491 = vector.shape_cast %483 : vector<8x32xf32> to vector<1x8x32xf32>
    tpu.vector_store %arg9[%c0_227, %c0_228, %c0_229], %491 {strides = array<i32>} : memref<2x8x32xf32, #tpu.memory_space<vmem>>, vector<1x8x32xf32>,
    %492 = vector.shape_cast %485 : vector<8x32xf32> to vector<1x8x32xf32>
    %493 = arith.index_cast %c5_i32 : i32 to index
    %c0_230 = arith.constant 0 : index
    %c0_231 = arith.constant 0 : index
    %494 = vector.load %arg5[%493, %c0_230, %c0_231] : memref<8x8x64xf32, #tpu.memory_space<vmem>>, vector<1x8x32xf32>
    tpu.vector_store %arg5[%493, %c0_230, %c0_231], %492 {strides = array<i32>} : memref<8x8x64xf32, #tpu.memory_space<vmem>>, vector<1x8x32xf32>,
    %c7_i32_232 = arith.constant 7 : i32
    %495 = arith.subi %c7_i32_232, %c5_i32 : i32
    %496 = arith.index_cast %495 : i32 to index
    %c0_233 = arith.constant 0 : index
    %c0_234 = arith.constant 0 : index
    %497 = vector.load %arg2[%496, %c0_233, %c0_234] : memref<8x8x128xf32, #tpu.memory_space<vmem>>, vector<1x8x128xf32>
    %498 = vector.shape_cast %497 : vector<1x8x128xf32> to vector<8x128xf32>
    %c1_235 = arith.constant 1 : index
    %c0_236 = arith.constant 0 : index
    %c0_237 = arith.constant 0 : index
    %499 = vector.load %arg8[%c1_235, %c0_236, %c0_237] : memref<2x8x32xf32, #tpu.memory_space<vmem>>, vector<1x8x32xf32>
    %500 = vector.shape_cast %499 : vector<1x8x32xf32> to vector<8x32xf32>
    %c1_238 = arith.constant 1 : index
    %c0_239 = arith.constant 0 : index
    %c0_240 = arith.constant 0 : index
    %501 = vector.load %arg9[%c1_238, %c0_239, %c0_240] : memref<2x8x32xf32, #tpu.memory_space<vmem>>, vector<1x8x32xf32>
    %502 = vector.shape_cast %501 : vector<1x8x32xf32> to vector<8x32xf32>
    %503 = arith.truncf %500 : vector<8x32xf32> to vector<8x32xbf16>
    %cst_241 = arith.constant dense<0.000000e+00> : vector<8x128xf32>
    %504 = tpu.matmul %503, %5, %cst_241 {dimension_numbers = #tpu.dot_dimension_numbers<[1], [0], [0], [1], [0, 0, 1, 1], [], []>} : vector<8x32xbf16>, vector<32x128xbf16>, vector<8x128xf32> -> vector<8x128xf32>
    %505 = arith.addf %498, %504 : vector<8x128xf32>
    %506 = vector.extract_strided_slice %505 {offsets = [0, 0], sizes = [8, 32], strides = [1, 1]} : vector<8x128xf32> to vector<8x32xf32>
    %507 = arith.negf %506 : vector<8x32xf32>
    %508 = math.exp %507 : vector<8x32xf32>
    %cst_242 = arith.constant 1.000000e+00 : f32
    %509 = vector.broadcast %cst_242 : f32 to vector<8x32xf32>
    %510 = arith.addf %509, %508 : vector<8x32xf32>
    %511 = arith.divf %509, %510 : vector<8x32xf32>
    %512 = vector.extract_strided_slice %505 {offsets = [0, 32], sizes = [8, 32], strides = [1, 1]} : vector<8x128xf32> to vector<8x32xf32>
    %513 = arith.negf %512 : vector<8x32xf32>
    %514 = math.exp %513 : vector<8x32xf32>
    %cst_243 = arith.constant 1.000000e+00 : f32
    %515 = vector.broadcast %cst_243 : f32 to vector<8x32xf32>
    %516 = arith.addf %515, %514 : vector<8x32xf32>
    %517 = arith.divf %515, %516 : vector<8x32xf32>
    %518 = vector.extract_strided_slice %505 {offsets = [0, 64], sizes = [8, 32], strides = [1, 1]} : vector<8x128xf32> to vector<8x32xf32>
    %519 = math.tanh %518 : vector<8x32xf32>
    %520 = vector.extract_strided_slice %505 {offsets = [0, 96], sizes = [8, 32], strides = [1, 1]} : vector<8x128xf32> to vector<8x32xf32>
    %521 = arith.negf %520 : vector<8x32xf32>
    %522 = math.exp %521 : vector<8x32xf32>
    %cst_244 = arith.constant 1.000000e+00 : f32
    %523 = vector.broadcast %cst_244 : f32 to vector<8x32xf32>
    %524 = arith.addf %523, %522 : vector<8x32xf32>
    %525 = arith.divf %523, %524 : vector<8x32xf32>
    %526 = arith.mulf %517, %502 : vector<8x32xf32>
    %527 = arith.mulf %511, %519 : vector<8x32xf32>
    %528 = arith.addf %526, %527 : vector<8x32xf32>
    %529 = math.tanh %528 : vector<8x32xf32>
    %530 = arith.mulf %525, %529 : vector<8x32xf32>
    %c1_245 = arith.constant 1 : index
    %c0_246 = arith.constant 0 : index
    %c0_247 = arith.constant 0 : index
    %531 = vector.load %arg8[%c1_245, %c0_246, %c0_247] : memref<2x8x32xf32, #tpu.memory_space<vmem>>, vector<1x8x32xf32>
    %532 = vector.shape_cast %531 : vector<1x8x32xf32> to vector<8x32xf32>
    %533 = vector.shape_cast %530 : vector<8x32xf32> to vector<1x8x32xf32>
    tpu.vector_store %arg8[%c1_245, %c0_246, %c0_247], %533 {strides = array<i32>} : memref<2x8x32xf32, #tpu.memory_space<vmem>>, vector<1x8x32xf32>,
    %c1_248 = arith.constant 1 : index
    %c0_249 = arith.constant 0 : index
    %c0_250 = arith.constant 0 : index
    %534 = vector.load %arg9[%c1_248, %c0_249, %c0_250] : memref<2x8x32xf32, #tpu.memory_space<vmem>>, vector<1x8x32xf32>
    %535 = vector.shape_cast %534 : vector<1x8x32xf32> to vector<8x32xf32>
    %536 = vector.shape_cast %528 : vector<8x32xf32> to vector<1x8x32xf32>
    tpu.vector_store %arg9[%c1_248, %c0_249, %c0_250], %536 {strides = array<i32>} : memref<2x8x32xf32, #tpu.memory_space<vmem>>, vector<1x8x32xf32>,
    %537 = vector.shape_cast %530 : vector<8x32xf32> to vector<1x8x32xf32>
    %538 = arith.index_cast %495 : i32 to index
    %c0_251 = arith.constant 0 : index
    %c32_252 = arith.constant 32 : index
    %539 = vector.load %arg5[%538, %c0_251, %c32_252] : memref<8x8x64xf32, #tpu.memory_space<vmem>>, vector<1x8x32xf32>
    tpu.vector_store %arg5[%538, %c0_251, %c32_252], %537 {strides = array<i32>} : memref<8x8x64xf32, #tpu.memory_space<vmem>>, vector<1x8x32xf32>,
    %c6_i32 = arith.constant 6 : i32
    %540 = arith.index_cast %c6_i32 : i32 to index
    %c0_253 = arith.constant 0 : index
    %c0_254 = arith.constant 0 : index
    %541 = vector.load %arg1[%540, %c0_253, %c0_254] : memref<8x8x128xf32, #tpu.memory_space<vmem>>, vector<1x8x128xf32>
    %542 = vector.shape_cast %541 : vector<1x8x128xf32> to vector<8x128xf32>
    %c0_255 = arith.constant 0 : index
    %c0_256 = arith.constant 0 : index
    %c0_257 = arith.constant 0 : index
    %543 = vector.load %arg8[%c0_255, %c0_256, %c0_257] : memref<2x8x32xf32, #tpu.memory_space<vmem>>, vector<1x8x32xf32>
    %544 = vector.shape_cast %543 : vector<1x8x32xf32> to vector<8x32xf32>
    %c0_258 = arith.constant 0 : index
    %c0_259 = arith.constant 0 : index
    %c0_260 = arith.constant 0 : index
    %545 = vector.load %arg9[%c0_258, %c0_259, %c0_260] : memref<2x8x32xf32, #tpu.memory_space<vmem>>, vector<1x8x32xf32>
    %546 = vector.shape_cast %545 : vector<1x8x32xf32> to vector<8x32xf32>
    %547 = arith.truncf %544 : vector<8x32xf32> to vector<8x32xbf16>
    %cst_261 = arith.constant dense<0.000000e+00> : vector<8x128xf32>
    %548 = tpu.matmul %547, %4, %cst_261 {dimension_numbers = #tpu.dot_dimension_numbers<[1], [0], [0], [1], [0, 0, 1, 1], [], []>} : vector<8x32xbf16>, vector<32x128xbf16>, vector<8x128xf32> -> vector<8x128xf32>
    %549 = arith.addf %542, %548 : vector<8x128xf32>
    %550 = vector.extract_strided_slice %549 {offsets = [0, 0], sizes = [8, 32], strides = [1, 1]} : vector<8x128xf32> to vector<8x32xf32>
    %551 = arith.negf %550 : vector<8x32xf32>
    %552 = math.exp %551 : vector<8x32xf32>
    %cst_262 = arith.constant 1.000000e+00 : f32
    %553 = vector.broadcast %cst_262 : f32 to vector<8x32xf32>
    %554 = arith.addf %553, %552 : vector<8x32xf32>
    %555 = arith.divf %553, %554 : vector<8x32xf32>
    %556 = vector.extract_strided_slice %549 {offsets = [0, 32], sizes = [8, 32], strides = [1, 1]} : vector<8x128xf32> to vector<8x32xf32>
    %557 = arith.negf %556 : vector<8x32xf32>
    %558 = math.exp %557 : vector<8x32xf32>
    %cst_263 = arith.constant 1.000000e+00 : f32
    %559 = vector.broadcast %cst_263 : f32 to vector<8x32xf32>
    %560 = arith.addf %559, %558 : vector<8x32xf32>
    %561 = arith.divf %559, %560 : vector<8x32xf32>
    %562 = vector.extract_strided_slice %549 {offsets = [0, 64], sizes = [8, 32], strides = [1, 1]} : vector<8x128xf32> to vector<8x32xf32>
    %563 = math.tanh %562 : vector<8x32xf32>
    %564 = vector.extract_strided_slice %549 {offsets = [0, 96], sizes = [8, 32], strides = [1, 1]} : vector<8x128xf32> to vector<8x32xf32>
    %565 = arith.negf %564 : vector<8x32xf32>
    %566 = math.exp %565 : vector<8x32xf32>
    %cst_264 = arith.constant 1.000000e+00 : f32
    %567 = vector.broadcast %cst_264 : f32 to vector<8x32xf32>
    %568 = arith.addf %567, %566 : vector<8x32xf32>
    %569 = arith.divf %567, %568 : vector<8x32xf32>
    %570 = arith.mulf %561, %546 : vector<8x32xf32>
    %571 = arith.mulf %555, %563 : vector<8x32xf32>
    %572 = arith.addf %570, %571 : vector<8x32xf32>
    %573 = math.tanh %572 : vector<8x32xf32>
    %574 = arith.mulf %569, %573 : vector<8x32xf32>
    %c0_265 = arith.constant 0 : index
    %c0_266 = arith.constant 0 : index
    %c0_267 = arith.constant 0 : index
    %575 = vector.load %arg8[%c0_265, %c0_266, %c0_267] : memref<2x8x32xf32, #tpu.memory_space<vmem>>, vector<1x8x32xf32>
    %576 = vector.shape_cast %575 : vector<1x8x32xf32> to vector<8x32xf32>
    %577 = vector.shape_cast %574 : vector<8x32xf32> to vector<1x8x32xf32>
    tpu.vector_store %arg8[%c0_265, %c0_266, %c0_267], %577 {strides = array<i32>} : memref<2x8x32xf32, #tpu.memory_space<vmem>>, vector<1x8x32xf32>,
    %c0_268 = arith.constant 0 : index
    %c0_269 = arith.constant 0 : index
    %c0_270 = arith.constant 0 : index
    %578 = vector.load %arg9[%c0_268, %c0_269, %c0_270] : memref<2x8x32xf32, #tpu.memory_space<vmem>>, vector<1x8x32xf32>
    %579 = vector.shape_cast %578 : vector<1x8x32xf32> to vector<8x32xf32>
    %580 = vector.shape_cast %572 : vector<8x32xf32> to vector<1x8x32xf32>
    tpu.vector_store %arg9[%c0_268, %c0_269, %c0_270], %580 {strides = array<i32>} : memref<2x8x32xf32, #tpu.memory_space<vmem>>, vector<1x8x32xf32>,
    %581 = vector.shape_cast %574 : vector<8x32xf32> to vector<1x8x32xf32>
    %582 = arith.index_cast %c6_i32 : i32 to index
    %c0_271 = arith.constant 0 : index
    %c0_272 = arith.constant 0 : index
    %583 = vector.load %arg5[%582, %c0_271, %c0_272] : memref<8x8x64xf32, #tpu.memory_space<vmem>>, vector<1x8x32xf32>
    tpu.vector_store %arg5[%582, %c0_271, %c0_272], %581 {strides = array<i32>} : memref<8x8x64xf32, #tpu.memory_space<vmem>>, vector<1x8x32xf32>,
    %c7_i32_273 = arith.constant 7 : i32
    %584 = arith.subi %c7_i32_273, %c6_i32 : i32
    %585 = arith.index_cast %584 : i32 to index
    %c0_274 = arith.constant 0 : index
    %c0_275 = arith.constant 0 : index
    %586 = vector.load %arg2[%585, %c0_274, %c0_275] : memref<8x8x128xf32, #tpu.memory_space<vmem>>, vector<1x8x128xf32>
    %587 = vector.shape_cast %586 : vector<1x8x128xf32> to vector<8x128xf32>
    %c1_276 = arith.constant 1 : index
    %c0_277 = arith.constant 0 : index
    %c0_278 = arith.constant 0 : index
    %588 = vector.load %arg8[%c1_276, %c0_277, %c0_278] : memref<2x8x32xf32, #tpu.memory_space<vmem>>, vector<1x8x32xf32>
    %589 = vector.shape_cast %588 : vector<1x8x32xf32> to vector<8x32xf32>
    %c1_279 = arith.constant 1 : index
    %c0_280 = arith.constant 0 : index
    %c0_281 = arith.constant 0 : index
    %590 = vector.load %arg9[%c1_279, %c0_280, %c0_281] : memref<2x8x32xf32, #tpu.memory_space<vmem>>, vector<1x8x32xf32>
    %591 = vector.shape_cast %590 : vector<1x8x32xf32> to vector<8x32xf32>
    %592 = arith.truncf %589 : vector<8x32xf32> to vector<8x32xbf16>
    %cst_282 = arith.constant dense<0.000000e+00> : vector<8x128xf32>
    %593 = tpu.matmul %592, %5, %cst_282 {dimension_numbers = #tpu.dot_dimension_numbers<[1], [0], [0], [1], [0, 0, 1, 1], [], []>} : vector<8x32xbf16>, vector<32x128xbf16>, vector<8x128xf32> -> vector<8x128xf32>
    %594 = arith.addf %587, %593 : vector<8x128xf32>
    %595 = vector.extract_strided_slice %594 {offsets = [0, 0], sizes = [8, 32], strides = [1, 1]} : vector<8x128xf32> to vector<8x32xf32>
    %596 = arith.negf %595 : vector<8x32xf32>
    %597 = math.exp %596 : vector<8x32xf32>
    %cst_283 = arith.constant 1.000000e+00 : f32
    %598 = vector.broadcast %cst_283 : f32 to vector<8x32xf32>
    %599 = arith.addf %598, %597 : vector<8x32xf32>
    %600 = arith.divf %598, %599 : vector<8x32xf32>
    %601 = vector.extract_strided_slice %594 {offsets = [0, 32], sizes = [8, 32], strides = [1, 1]} : vector<8x128xf32> to vector<8x32xf32>
    %602 = arith.negf %601 : vector<8x32xf32>
    %603 = math.exp %602 : vector<8x32xf32>
    %cst_284 = arith.constant 1.000000e+00 : f32
    %604 = vector.broadcast %cst_284 : f32 to vector<8x32xf32>
    %605 = arith.addf %604, %603 : vector<8x32xf32>
    %606 = arith.divf %604, %605 : vector<8x32xf32>
    %607 = vector.extract_strided_slice %594 {offsets = [0, 64], sizes = [8, 32], strides = [1, 1]} : vector<8x128xf32> to vector<8x32xf32>
    %608 = math.tanh %607 : vector<8x32xf32>
    %609 = vector.extract_strided_slice %594 {offsets = [0, 96], sizes = [8, 32], strides = [1, 1]} : vector<8x128xf32> to vector<8x32xf32>
    %610 = arith.negf %609 : vector<8x32xf32>
    %611 = math.exp %610 : vector<8x32xf32>
    %cst_285 = arith.constant 1.000000e+00 : f32
    %612 = vector.broadcast %cst_285 : f32 to vector<8x32xf32>
    %613 = arith.addf %612, %611 : vector<8x32xf32>
    %614 = arith.divf %612, %613 : vector<8x32xf32>
    %615 = arith.mulf %606, %591 : vector<8x32xf32>
    %616 = arith.mulf %600, %608 : vector<8x32xf32>
    %617 = arith.addf %615, %616 : vector<8x32xf32>
    %618 = math.tanh %617 : vector<8x32xf32>
    %619 = arith.mulf %614, %618 : vector<8x32xf32>
    %c1_286 = arith.constant 1 : index
    %c0_287 = arith.constant 0 : index
    %c0_288 = arith.constant 0 : index
    %620 = vector.load %arg8[%c1_286, %c0_287, %c0_288] : memref<2x8x32xf32, #tpu.memory_space<vmem>>, vector<1x8x32xf32>
    %621 = vector.shape_cast %620 : vector<1x8x32xf32> to vector<8x32xf32>
    %622 = vector.shape_cast %619 : vector<8x32xf32> to vector<1x8x32xf32>
    tpu.vector_store %arg8[%c1_286, %c0_287, %c0_288], %622 {strides = array<i32>} : memref<2x8x32xf32, #tpu.memory_space<vmem>>, vector<1x8x32xf32>,
    %c1_289 = arith.constant 1 : index
    %c0_290 = arith.constant 0 : index
    %c0_291 = arith.constant 0 : index
    %623 = vector.load %arg9[%c1_289, %c0_290, %c0_291] : memref<2x8x32xf32, #tpu.memory_space<vmem>>, vector<1x8x32xf32>
    %624 = vector.shape_cast %623 : vector<1x8x32xf32> to vector<8x32xf32>
    %625 = vector.shape_cast %617 : vector<8x32xf32> to vector<1x8x32xf32>
    tpu.vector_store %arg9[%c1_289, %c0_290, %c0_291], %625 {strides = array<i32>} : memref<2x8x32xf32, #tpu.memory_space<vmem>>, vector<1x8x32xf32>,
    %626 = vector.shape_cast %619 : vector<8x32xf32> to vector<1x8x32xf32>
    %627 = arith.index_cast %584 : i32 to index
    %c0_292 = arith.constant 0 : index
    %c32_293 = arith.constant 32 : index
    %628 = vector.load %arg5[%627, %c0_292, %c32_293] : memref<8x8x64xf32, #tpu.memory_space<vmem>>, vector<1x8x32xf32>
    tpu.vector_store %arg5[%627, %c0_292, %c32_293], %626 {strides = array<i32>} : memref<8x8x64xf32, #tpu.memory_space<vmem>>, vector<1x8x32xf32>,
    %c7_i32_294 = arith.constant 7 : i32
    %629 = arith.index_cast %c7_i32_294 : i32 to index
    %c0_295 = arith.constant 0 : index
    %c0_296 = arith.constant 0 : index
    %630 = vector.load %arg1[%629, %c0_295, %c0_296] : memref<8x8x128xf32, #tpu.memory_space<vmem>>, vector<1x8x128xf32>
    %631 = vector.shape_cast %630 : vector<1x8x128xf32> to vector<8x128xf32>
    %c0_297 = arith.constant 0 : index
    %c0_298 = arith.constant 0 : index
    %c0_299 = arith.constant 0 : index
    %632 = vector.load %arg8[%c0_297, %c0_298, %c0_299] : memref<2x8x32xf32, #tpu.memory_space<vmem>>, vector<1x8x32xf32>
    %633 = vector.shape_cast %632 : vector<1x8x32xf32> to vector<8x32xf32>
    %c0_300 = arith.constant 0 : index
    %c0_301 = arith.constant 0 : index
    %c0_302 = arith.constant 0 : index
    %634 = vector.load %arg9[%c0_300, %c0_301, %c0_302] : memref<2x8x32xf32, #tpu.memory_space<vmem>>, vector<1x8x32xf32>
    %635 = vector.shape_cast %634 : vector<1x8x32xf32> to vector<8x32xf32>
    %636 = arith.truncf %633 : vector<8x32xf32> to vector<8x32xbf16>
    %cst_303 = arith.constant dense<0.000000e+00> : vector<8x128xf32>
    %637 = tpu.matmul %636, %4, %cst_303 {dimension_numbers = #tpu.dot_dimension_numbers<[1], [0], [0], [1], [0, 0, 1, 1], [], []>} : vector<8x32xbf16>, vector<32x128xbf16>, vector<8x128xf32> -> vector<8x128xf32>
    %638 = arith.addf %631, %637 : vector<8x128xf32>
    %639 = vector.extract_strided_slice %638 {offsets = [0, 0], sizes = [8, 32], strides = [1, 1]} : vector<8x128xf32> to vector<8x32xf32>
    %640 = arith.negf %639 : vector<8x32xf32>
    %641 = math.exp %640 : vector<8x32xf32>
    %cst_304 = arith.constant 1.000000e+00 : f32
    %642 = vector.broadcast %cst_304 : f32 to vector<8x32xf32>
    %643 = arith.addf %642, %641 : vector<8x32xf32>
    %644 = arith.divf %642, %643 : vector<8x32xf32>
    %645 = vector.extract_strided_slice %638 {offsets = [0, 32], sizes = [8, 32], strides = [1, 1]} : vector<8x128xf32> to vector<8x32xf32>
    %646 = arith.negf %645 : vector<8x32xf32>
    %647 = math.exp %646 : vector<8x32xf32>
    %cst_305 = arith.constant 1.000000e+00 : f32
    %648 = vector.broadcast %cst_305 : f32 to vector<8x32xf32>
    %649 = arith.addf %648, %647 : vector<8x32xf32>
    %650 = arith.divf %648, %649 : vector<8x32xf32>
    %651 = vector.extract_strided_slice %638 {offsets = [0, 64], sizes = [8, 32], strides = [1, 1]} : vector<8x128xf32> to vector<8x32xf32>
    %652 = math.tanh %651 : vector<8x32xf32>
    %653 = vector.extract_strided_slice %638 {offsets = [0, 96], sizes = [8, 32], strides = [1, 1]} : vector<8x128xf32> to vector<8x32xf32>
    %654 = arith.negf %653 : vector<8x32xf32>
    %655 = math.exp %654 : vector<8x32xf32>
    %cst_306 = arith.constant 1.000000e+00 : f32
    %656 = vector.broadcast %cst_306 : f32 to vector<8x32xf32>
    %657 = arith.addf %656, %655 : vector<8x32xf32>
    %658 = arith.divf %656, %657 : vector<8x32xf32>
    %659 = arith.mulf %650, %635 : vector<8x32xf32>
    %660 = arith.mulf %644, %652 : vector<8x32xf32>
    %661 = arith.addf %659, %660 : vector<8x32xf32>
    %662 = math.tanh %661 : vector<8x32xf32>
    %663 = arith.mulf %658, %662 : vector<8x32xf32>
    %c0_307 = arith.constant 0 : index
    %c0_308 = arith.constant 0 : index
    %c0_309 = arith.constant 0 : index
    %664 = vector.load %arg8[%c0_307, %c0_308, %c0_309] : memref<2x8x32xf32, #tpu.memory_space<vmem>>, vector<1x8x32xf32>
    %665 = vector.shape_cast %664 : vector<1x8x32xf32> to vector<8x32xf32>
    %666 = vector.shape_cast %663 : vector<8x32xf32> to vector<1x8x32xf32>
    tpu.vector_store %arg8[%c0_307, %c0_308, %c0_309], %666 {strides = array<i32>} : memref<2x8x32xf32, #tpu.memory_space<vmem>>, vector<1x8x32xf32>,
    %c0_310 = arith.constant 0 : index
    %c0_311 = arith.constant 0 : index
    %c0_312 = arith.constant 0 : index
    %667 = vector.load %arg9[%c0_310, %c0_311, %c0_312] : memref<2x8x32xf32, #tpu.memory_space<vmem>>, vector<1x8x32xf32>
    %668 = vector.shape_cast %667 : vector<1x8x32xf32> to vector<8x32xf32>
    %669 = vector.shape_cast %661 : vector<8x32xf32> to vector<1x8x32xf32>
    tpu.vector_store %arg9[%c0_310, %c0_311, %c0_312], %669 {strides = array<i32>} : memref<2x8x32xf32, #tpu.memory_space<vmem>>, vector<1x8x32xf32>,
    %670 = vector.shape_cast %663 : vector<8x32xf32> to vector<1x8x32xf32>
    %671 = arith.index_cast %c7_i32_294 : i32 to index
    %c0_313 = arith.constant 0 : index
    %c0_314 = arith.constant 0 : index
    %672 = vector.load %arg5[%671, %c0_313, %c0_314] : memref<8x8x64xf32, #tpu.memory_space<vmem>>, vector<1x8x32xf32>
    tpu.vector_store %arg5[%671, %c0_313, %c0_314], %670 {strides = array<i32>} : memref<8x8x64xf32, #tpu.memory_space<vmem>>, vector<1x8x32xf32>,
    %c7_i32_315 = arith.constant 7 : i32
    %673 = arith.subi %c7_i32_315, %c7_i32_294 : i32
    %674 = arith.index_cast %673 : i32 to index
    %c0_316 = arith.constant 0 : index
    %c0_317 = arith.constant 0 : index
    %675 = vector.load %arg2[%674, %c0_316, %c0_317] : memref<8x8x128xf32, #tpu.memory_space<vmem>>, vector<1x8x128xf32>
    %676 = vector.shape_cast %675 : vector<1x8x128xf32> to vector<8x128xf32>
    %c1_318 = arith.constant 1 : index
    %c0_319 = arith.constant 0 : index
    %c0_320 = arith.constant 0 : index
    %677 = vector.load %arg8[%c1_318, %c0_319, %c0_320] : memref<2x8x32xf32, #tpu.memory_space<vmem>>, vector<1x8x32xf32>
    %678 = vector.shape_cast %677 : vector<1x8x32xf32> to vector<8x32xf32>
    %c1_321 = arith.constant 1 : index
    %c0_322 = arith.constant 0 : index
    %c0_323 = arith.constant 0 : index
    %679 = vector.load %arg9[%c1_321, %c0_322, %c0_323] : memref<2x8x32xf32, #tpu.memory_space<vmem>>, vector<1x8x32xf32>
    %680 = vector.shape_cast %679 : vector<1x8x32xf32> to vector<8x32xf32>
    %681 = arith.truncf %678 : vector<8x32xf32> to vector<8x32xbf16>
    %cst_324 = arith.constant dense<0.000000e+00> : vector<8x128xf32>
    %682 = tpu.matmul %681, %5, %cst_324 {dimension_numbers = #tpu.dot_dimension_numbers<[1], [0], [0], [1], [0, 0, 1, 1], [], []>} : vector<8x32xbf16>, vector<32x128xbf16>, vector<8x128xf32> -> vector<8x128xf32>
    %683 = arith.addf %676, %682 : vector<8x128xf32>
    %684 = vector.extract_strided_slice %683 {offsets = [0, 0], sizes = [8, 32], strides = [1, 1]} : vector<8x128xf32> to vector<8x32xf32>
    %685 = arith.negf %684 : vector<8x32xf32>
    %686 = math.exp %685 : vector<8x32xf32>
    %cst_325 = arith.constant 1.000000e+00 : f32
    %687 = vector.broadcast %cst_325 : f32 to vector<8x32xf32>
    %688 = arith.addf %687, %686 : vector<8x32xf32>
    %689 = arith.divf %687, %688 : vector<8x32xf32>
    %690 = vector.extract_strided_slice %683 {offsets = [0, 32], sizes = [8, 32], strides = [1, 1]} : vector<8x128xf32> to vector<8x32xf32>
    %691 = arith.negf %690 : vector<8x32xf32>
    %692 = math.exp %691 : vector<8x32xf32>
    %cst_326 = arith.constant 1.000000e+00 : f32
    %693 = vector.broadcast %cst_326 : f32 to vector<8x32xf32>
    %694 = arith.addf %693, %692 : vector<8x32xf32>
    %695 = arith.divf %693, %694 : vector<8x32xf32>
    %696 = vector.extract_strided_slice %683 {offsets = [0, 64], sizes = [8, 32], strides = [1, 1]} : vector<8x128xf32> to vector<8x32xf32>
    %697 = math.tanh %696 : vector<8x32xf32>
    %698 = vector.extract_strided_slice %683 {offsets = [0, 96], sizes = [8, 32], strides = [1, 1]} : vector<8x128xf32> to vector<8x32xf32>
    %699 = arith.negf %698 : vector<8x32xf32>
    %700 = math.exp %699 : vector<8x32xf32>
    %cst_327 = arith.constant 1.000000e+00 : f32
    %701 = vector.broadcast %cst_327 : f32 to vector<8x32xf32>
    %702 = arith.addf %701, %700 : vector<8x32xf32>
    %703 = arith.divf %701, %702 : vector<8x32xf32>
    %704 = arith.mulf %695, %680 : vector<8x32xf32>
    %705 = arith.mulf %689, %697 : vector<8x32xf32>
    %706 = arith.addf %704, %705 : vector<8x32xf32>
    %707 = math.tanh %706 : vector<8x32xf32>
    %708 = arith.mulf %703, %707 : vector<8x32xf32>
    %c1_328 = arith.constant 1 : index
    %c0_329 = arith.constant 0 : index
    %c0_330 = arith.constant 0 : index
    %709 = vector.load %arg8[%c1_328, %c0_329, %c0_330] : memref<2x8x32xf32, #tpu.memory_space<vmem>>, vector<1x8x32xf32>
    %710 = vector.shape_cast %709 : vector<1x8x32xf32> to vector<8x32xf32>
    %711 = vector.shape_cast %708 : vector<8x32xf32> to vector<1x8x32xf32>
    tpu.vector_store %arg8[%c1_328, %c0_329, %c0_330], %711 {strides = array<i32>} : memref<2x8x32xf32, #tpu.memory_space<vmem>>, vector<1x8x32xf32>,
    %c1_331 = arith.constant 1 : index
    %c0_332 = arith.constant 0 : index
    %c0_333 = arith.constant 0 : index
    %712 = vector.load %arg9[%c1_331, %c0_332, %c0_333] : memref<2x8x32xf32, #tpu.memory_space<vmem>>, vector<1x8x32xf32>
    %713 = vector.shape_cast %712 : vector<1x8x32xf32> to vector<8x32xf32>
    %714 = vector.shape_cast %706 : vector<8x32xf32> to vector<1x8x32xf32>
    tpu.vector_store %arg9[%c1_331, %c0_332, %c0_333], %714 {strides = array<i32>} : memref<2x8x32xf32, #tpu.memory_space<vmem>>, vector<1x8x32xf32>,
    %715 = vector.shape_cast %708 : vector<8x32xf32> to vector<1x8x32xf32>
    %716 = arith.index_cast %673 : i32 to index
    %c0_334 = arith.constant 0 : index
    %c32_335 = arith.constant 32 : index
    %717 = vector.load %arg5[%716, %c0_334, %c32_335] : memref<8x8x64xf32, #tpu.memory_space<vmem>>, vector<1x8x32xf32>
    tpu.vector_store %arg5[%716, %c0_334, %c32_335], %715 {strides = array<i32>} : memref<8x8x64xf32, #tpu.memory_space<vmem>>, vector<1x8x32xf32>,
    %c8_i32 = arith.constant 8 : i32
    %c0_336 = arith.constant 0 : index
    %c0_337 = arith.constant 0 : index
    %c0_338 = arith.constant 0 : index
    %718 = vector.load %arg8[%c0_336, %c0_337, %c0_338] : memref<2x8x32xf32, #tpu.memory_space<vmem>>, vector<2x8x32xf32>
    %c0_339 = arith.constant 0 : index
    %c0_340 = arith.constant 0 : index
    %c0_341 = arith.constant 0 : index
    %719 = vector.load %arg6[%c0_339, %c0_340, %c0_341] : memref<2x8x32xf32, #tpu.memory_space<vmem>>, vector<2x8x32xf32>
    tpu.vector_store %arg6[%c0_339, %c0_340, %c0_341], %718 {strides = array<i32>} : memref<2x8x32xf32, #tpu.memory_space<vmem>>, vector<2x8x32xf32>,
    %c0_342 = arith.constant 0 : index
    %c0_343 = arith.constant 0 : index
    %c0_344 = arith.constant 0 : index
    %720 = vector.load %arg9[%c0_342, %c0_343, %c0_344] : memref<2x8x32xf32, #tpu.memory_space<vmem>>, vector<2x8x32xf32>
    %c0_345 = arith.constant 0 : index
    %c0_346 = arith.constant 0 : index
    %c0_347 = arith.constant 0 : index
    %721 = vector.load %arg7[%c0_345, %c0_346, %c0_347] : memref<2x8x32xf32, #tpu.memory_space<vmem>>, vector<2x8x32xf32>
    tpu.vector_store %arg7[%c0_345, %c0_346, %c0_347], %720 {strides = array<i32>} : memref<2x8x32xf32, #tpu.memory_space<vmem>>, vector<2x8x32xf32>,
    return
  }
  func.func @transform_0(%arg0: i32) -> (i32, i32, i32) {
    %c0_i32 = arith.constant 0 : i32
    %c0_i32_0 = arith.constant 0 : i32
    %c0_i32_1 = arith.constant 0 : i32
    %c0_i32_2 = arith.constant 0 : i32
    return %c0_i32, %c0_i32_0, %c0_i32_1 : i32, i32, i32
  }
  func.func @transform_1(%arg0: i32) -> (i32, i32, i32) {
    %c0_i32 = arith.constant 0 : i32
    %c0_i32_0 = arith.constant 0 : i32
    %c0_i32_1 = arith.constant 0 : i32
    %c0_i32_2 = arith.constant 0 : i32
    return %c0_i32, %c0_i32_0, %c0_i32_1 : i32, i32, i32
  }
  func.func @transform_2(%arg0: i32) -> (i32, i32) {
    %c0_i32 = arith.constant 0 : i32
    %c0_i32_0 = arith.constant 0 : i32
    %c0_i32_1 = arith.constant 0 : i32
    return %c0_i32, %c0_i32_0 : i32, i32
  }
  func.func @transform_3(%arg0: i32) -> (i32, i32) {
    %c0_i32 = arith.constant 0 : i32
    %c0_i32_0 = arith.constant 0 : i32
    %c0_i32_1 = arith.constant 0 : i32
    return %c0_i32, %c0_i32_0 : i32, i32
  }
  func.func @transform_4(%arg0: i32) -> (i32, i32, i32) {
    %c0_i32 = arith.constant 0 : i32
    %c0_i32_0 = arith.constant 0 : i32
    %c0_i32_1 = arith.constant 0 : i32
    %c0_i32_2 = arith.constant 0 : i32
    return %c0_i32, %c0_i32_0, %c0_i32_1 : i32, i32, i32
  }
  func.func @transform_5(%arg0: i32) -> (i32, i32, i32) {
    %c0_i32 = arith.constant 0 : i32
    %c0_i32_0 = arith.constant 0 : i32
    %c0_i32_1 = arith.constant 0 : i32
    %c0_i32_2 = arith.constant 0 : i32
    return %c0_i32, %c0_i32_0, %c0_i32_1 : i32, i32, i32
  }
  func.func @transform_6(%arg0: i32) -> (i32, i32, i32) {
    %c0_i32 = arith.constant 0 : i32
    %c0_i32_0 = arith.constant 0 : i32
    %c0_i32_1 = arith.constant 0 : i32
    %c0_i32_2 = arith.constant 0 : i32
    return %c0_i32, %c0_i32_0, %c0_i32_1 : i32, i32, i32
  }
}

</mosaic_0001>

<llo_original>
// kernel: tpu_custom_call.1
$region0: #{tpu_custom_call.1}
  #allocation0 [shape = 'u32[]', space=smem, size = 0x4, offset = 0x4, fixed_abs, tag = 'smem constant byte address 0x4 - core index']
  #allocation1 [shape = 'u32[72,128]{1,0:T(1,128)}', space=vmem, size = 0x9000, scoped, tag = 'internal scratch']
  #allocation2 [shape = 'f32[2,8,32]{2,1,0:T(8,128)}', space=vmem, size = 0x2000, scoped, tag = 'scratch operand']
  #allocation3 [shape = 'f32[2,8,32]{2,1,0:T(8,128)}', space=vmem, size = 0x2000, scoped, tag = 'scratch operand']
  %s0 = inlined_call_operand.hbm [shape: f32[8,8,128], index: 0, kind: input, shape index: {}]
  %s1 = inlined_call_operand.hbm [shape: f32[8,8,128], index: 1, kind: input, shape index: {}]
  %s2 = inlined_call_operand.hbm [shape: bf16[32,128], index: 2, kind: input, shape index: {}]
  %s3 = inlined_call_operand.hbm [shape: bf16[32,128], index: 3, kind: input, shape index: {}]
  %s4 = inlined_call_operand.hbm [shape: f32[8,8,64], index: 4, kind: output, shape index: {0}]
  %s5 = inlined_call_operand.hbm [shape: f32[2,8,32], index: 5, kind: output, shape index: {1}]
  %s6 = inlined_call_operand.hbm [shape: f32[2,8,32], index: 6, kind: output, shape index: {2}]
  %7 = xla_tuple %s4, %s5, %s6
  %s8 = sld [smem:[#allocation0]]
  $region58: #{tpu_custom_call.1} parent=0
    _
  %s10 = ssub.s32 1, %s8
  %s11 = scalar_select 0, %s10, %s8
  $region1: #{tpu_custom_call.1} parent=0
    #allocation4 [shape = 'u8[32768]{0}', space=vmem, size = 0x8000, scoped, tag = 'input window, operand 0, single buffered']
    #allocation5 [shape = 's32[1]{0}', space=sflag, size = 0x4, scoped, tag = 'scoped memory for tpu_custom_call.1']
    #allocation6 [shape = 's32[1]{0}', space=sflag, size = 0x4, scoped, tag = 'scoped memory for tpu_custom_call.1']
    #allocation7 [shape = 'u8[32768]{0}', space=vmem, size = 0x8000, scoped, tag = 'input window, operand 1, single buffered']
    #allocation8 [shape = 's32[1]{0}', space=sflag, size = 0x4, scoped, tag = 'scoped memory for tpu_custom_call.1']
    #allocation9 [shape = 'u8[8192]{0}', space=vmem, size = 0x2000, scoped, tag = 'input window, operand 2, single buffered']
    #allocation10 [shape = 'u8[8192]{0}', space=vmem, size = 0x2000, scoped, tag = 'input window, operand 3, single buffered']
    #allocation11 [shape = 's32[1]{0}', space=sflag, size = 0x4, scoped, tag = 'scoped memory for tpu_custom_call.1']
    #allocation12 [shape = 'u8[32768]{0}', space=vmem, size = 0x8000, scoped, tag = 'output window, operand 0, single buffered']
    #allocation13 [shape = 'u8[8192]{0}', space=vmem, size = 0x2000, scoped, tag = 'output window, operand 1, single buffered']
    #allocation14 [shape = 's32[1]{0}', space=sflag, size = 0x4, scoped, tag = 'scoped memory for tpu_custom_call.1']
    #allocation15 [shape = 'u8[8192]{0}', space=vmem, size = 0x2000, scoped, tag = 'output window, operand 2, single buffered']
    %12 = vsyncpa [#allocation5], 0
    %13 = vsyncpa [#allocation8], 0
    %14 = vsyncpa [#allocation11], 0
    %15 = vsyncpa [#allocation6], 0
    %16 = vsyncpa [#allocation14], 0
    // Predicated region
    $region2: #{tpu_custom_call.1} parent=1 // pred_check
      _
    $region3: #{tpu_custom_call.1} parent=1 // pred_check_branch
      %18 = sbr.rel (0) target = $region5
    $region4: #{tpu_custom_call.1} parent=1 // pred_region
      %20 = vsyncadd [#allocation5], 0
      %s21 = sshll.u32 %s0, 4
      %s22 = int_to_ptr.hbm [resolvable:$true] %s21
      %s23 = sshll.u32 [#allocation4], 4
      %s24 = int_to_ptr.vmem [resolvable:$true] %s23
      %29 = dma.hbm_to_vmem [thread:$0]  %s22, 1024, %s24, [#allocation5], 128, 128, 8
    $region5: #{tpu_custom_call.1} parent=1 // pred_fallthru
      _
    // Predicated region
    $region6: #{tpu_custom_call.1} parent=1 // pred_check
      _
    $region7: #{tpu_custom_call.1} parent=1 // pred_check_branch
      %31 = sbr.rel (0) target = $region9
    $region8: #{tpu_custom_call.1} parent=1 // pred_region
      %33 = vsyncadd [#allocation8], 0
      %s34 = sshll.u32 %s1, 4
      %s35 = int_to_ptr.hbm [resolvable:$true] %s34
      %s36 = sshll.u32 [#allocation7], 4
      %s37 = int_to_ptr.vmem [resolvable:$true] %s36
      %42 = dma.hbm_to_vmem [thread:$0]  %s35, 1024, %s37, [#allocation8], 128, 128, 8
    $region9: #{tpu_custom_call.1} parent=1 // pred_fallthru
      _
    // Predicated region
    $region10: #{tpu_custom_call.1} parent=1 // pred_check
      _
    $region11: #{tpu_custom_call.1} parent=1 // pred_check_branch
      %44 = sbr.rel (0) target = $region13
    $region12: #{tpu_custom_call.1} parent=1 // pred_region
      %46 = vsyncadd [#allocation8], 0
      %s47 = sshll.u32 %s2, 4
      %s48 = int_to_ptr.hbm [resolvable:$true] %s47
      %s49 = sshll.u32 [#allocation9], 4
      %s50 = int_to_ptr.vmem [resolvable:$true] %s49
      %55 = dma.hbm_to_vmem [thread:$0]  %s48, 256, %s50, [#allocation8], 64, 64, 4
    $region13: #{tpu_custom_call.1} parent=1 // pred_fallthru
      _
    // Predicated region
    $region14: #{tpu_custom_call.1} parent=1 // pred_check
      _
    $region15: #{tpu_custom_call.1} parent=1 // pred_check_branch
      %57 = sbr.rel (0) target = $region17
    $region16: #{tpu_custom_call.1} parent=1 // pred_region
      %59 = vsyncadd [#allocation11], 0
      %s60 = sshll.u32 %s3, 4
      %s61 = int_to_ptr.hbm [resolvable:$true] %s60
      %s62 = sshll.u32 [#allocation10], 4
      %s63 = int_to_ptr.vmem [resolvable:$true] %s62
      %68 = dma.hbm_to_vmem [thread:$0]  %s61, 256, %s63, [#allocation11], 64, 64, 4
    $region17: #{tpu_custom_call.1} parent=1 // pred_fallthru
      _
    // Predicated region
    $region18: #{tpu_custom_call.1} parent=1 // pred_check
      _
    $region19: #{tpu_custom_call.1} parent=1 // pred_check_branch
      %70 = sbr.rel (0) target = $region21
    $region20: #{tpu_custom_call.1} parent=1 // pred_region
      %72 = dma.done [#allocation5], 1024
    $region21: #{tpu_custom_call.1} parent=1 // pred_fallthru
      _
    // Predicated region
    $region22: #{tpu_custom_call.1} parent=1 // pred_check
      _
    $region23: #{tpu_custom_call.1} parent=1 // pred_check_branch
      %74 = sbr.rel (0) target = $region25
    $region24: #{tpu_custom_call.1} parent=1 // pred_region
      %76 = dma.done [#allocation8], 1024
    $region25: #{tpu_custom_call.1} parent=1 // pred_fallthru
      _
    // Predicated region
    $region26: #{tpu_custom_call.1} parent=1 // pred_check
      _
    $region27: #{tpu_custom_call.1} parent=1 // pred_check_branch
      %78 = sbr.rel (0) target = $region29
    $region28: #{tpu_custom_call.1} parent=1 // pred_region
      %80 = dma.done [#allocation8], 256
    $region29: #{tpu_custom_call.1} parent=1 // pred_fallthru
      _
    // Predicated region
    $region30: #{tpu_custom_call.1} parent=1 // pred_check
      _
    $region31: #{tpu_custom_call.1} parent=1 // pred_check_branch
      %82 = sbr.rel (0) target = $region33
    $region32: #{tpu_custom_call.1} parent=1 // pred_region
      %84 = dma.done [#allocation11], 256
    $region33: #{tpu_custom_call.1} parent=1 // pred_fallthru
      _
    %vm86 = vcmask 261120
    %87 = vst.msk [vmem:[#allocation2] sm:$0xff] %vm86, 0.0
    %88 = vst.msk [vmem:[#allocation2 + $0x8] sm:$0xff] %vm86, 0.0
    %89 = vst.msk [vmem:[#allocation3] sm:$0xff] %vm86, 0.0
    %90 = vst.msk [vmem:[#allocation3 + $0x8] sm:$0xff] %vm86, 0.0
    %v91 = vld [vmem:[#allocation9] sm:$0xf]
    %v92 = vld [vmem:[#allocation9 + $0x4] sm:$0xf]
    %v93 = vld [vmem:[#allocation9 + $0x8] sm:$0xf]
    %v94 = vld [vmem:[#allocation9 + $0xc] sm:$0xf]
    %v95 = vld [vmem:[#allocation10] sm:$0xf]
    %v96 = vld [vmem:[#allocation10 + $0x4] sm:$0xf]
    %v97 = vld [vmem:[#allocation10 + $0x8] sm:$0xf]
    %v98 = vld [vmem:[#allocation10 + $0xc] sm:$0xf]
    %v99 = vld [vmem:[#allocation4] sm:$0xff]
    %v100 = vld [vmem:[#allocation2] sm:$0xff]
    %v101 = vld [vmem:[#allocation3] sm:$0xff]
    %v102 = vpack.c.bf16 %v100, %v100
    %v107 = vunpack.c.l.b16 %v91
    %v108 = vunpack.c.l.b16 %v92
    %v109 = vunpack.c.l.b16 %v93
    %v110 = vunpack.c.l.b16 %v94
    %v111 = vpack.c.b16 %v108, %v107
    %v112 = vpack.c.b16 %v110, %v109
    %v116 = vsel %vm86, %v102, 0
    %118 = vmatpush.bf16.msra.mxu0 0
    %119 = vmatpush.bf16.msra.mxu0 0
    %120 = vmatpush.bf16.msra.mxu0 0
    %121 = vmatpush.bf16.msra.mxu0 0
    %122 = vmatpush.bf16.msra.mxu0 0
    %123 = vmatpush.bf16.msra.mxu0 0
    %124 = vmatpush.bf16.msra.mxu0 %v112
    %125 = vmatpush.bf16.msra.mxu0 %v111
    %126 = vmatmul.bf16.gmra.mxu0 %v116
    %v127 = vpop.f32.mrf.mxu0
    %v128 = vadd.f32 0.0, %v127
    %v129 = vpop.f32.mrf.mxu0
    %130 = vdwg.mxu0
    %v131 = vadd.f32 %v99, %v128
    %v132 = vxor.u32 %v131, 2147483648
    %v133 = vmul.f32 %v132, 1.442695
    %v134 = vpow.pop %v133
    %v135 = vadd.f32 %v134, 1.0
    %v136 = vrcp.pop %v135
    %v137 = vmul.f32 %v135, %v136
    %v138 = vsub.f32 1.0, %v137
    %v139 = vmul.f32 %v136, %v138
    %v140 = vadd.f32 %v136, %v139
    %vm141 = vweird.f32 %v135
    %vm142 = vweird.f32 %v136
    %vm143 = vmor %vm141, %vm142
    %v144 = vsel %vm143, %v136, %v140
    %v145 = vand.u32 2147483647, %v135
    %vm146 = vcmp.eq.f32.partialorder %v145, 8.507059e+37
    %v147 = vand.u32 %v135, 2147483648
    %v148 = vor.u32 1.1754944e-38, %v147
    %v149 = vsel %vm146, %v148, %v144
    %v150 = vmul.f32 1.0, %v149
    %v151 = vtanh.pop %v131
    %153 = vrot.lane.b32.xlu0 %v101, 32
    %v154 = vpop.permute.xlu0 %153
    %v156 = vmul.f32 %v150, %v154
    %158 = vrot.lane.b32.xlu0 %v151, 64
    %v159 = vpop.permute.xlu0 %158
    %v161 = vmul.f32 %v150, %v159
    %163 = vrot.lane.b32.xlu0 %v161, 32
    %v164 = vpop.permute.xlu0 %163
    %v166 = vadd.f32 %v156, %v164
    %v167 = vtanh.pop %v166
    %169 = vrot.lane.b32.xlu0 %v167, 64
    %v170 = vpop.permute.xlu0 %169
    %v172 = vmul.f32 %v150, %v170
    %174 = vrot.lane.b32.xlu0 %v172, 32
    %v175 = vpop.permute.xlu0 %174
    %177 = vst.msk [vmem:[#allocation2] sm:$0xff] %vm86, %v175
    %179 = vrot.lane.b32.xlu0 %v166, 96
    %v180 = vpop.permute.xlu0 %179
    %182 = vst.msk [vmem:[#allocation3] sm:$0xff] %vm86, %v180
    %183 = vst.msk [vmem:[#allocation12] sm:$0xff] %vm86, %v175
    %s184 = scalar_lea.vmem [#allocation7], 56
    %v185 = vld [vmem:[%s184] sm:$0xff]
    %s186 = scalar_lea.vmem [#allocation2], 8
    %v187 = vld [vmem:[%s186] sm:$0xff]
    %s188 = scalar_lea.vmem [#allocation3], 8
    %v189 = vld [vmem:[%s188] sm:$0xff]
    %v190 = vpack.c.bf16 %v187, %v187
    %v195 = vunpack.c.l.b16 %v95
    %v196 = vunpack.c.l.b16 %v96
    %v197 = vunpack.c.l.b16 %v97
    %v198 = vunpack.c.l.b16 %v98
    %v199 = vpack.c.b16 %v196, %v195
    %v200 = vpack.c.b16 %v198, %v197
    %v204 = vsel %vm86, %v190, 0
    %206 = vmatpush.bf16.msra.mxu0 0
    %207 = vmatpush.bf16.msra.mxu0 0
    %208 = vmatpush.bf16.msra.mxu0 0
    %209 = vmatpush.bf16.msra.mxu0 0
    %210 = vmatpush.bf16.msra.mxu0 0
    %211 = vmatpush.bf16.msra.mxu0 0
    %212 = vmatpush.bf16.msra.mxu0 %v200
    %213 = vmatpush.bf16.msra.mxu0 %v199
    %214 = vmatmul.bf16.gmra.mxu0 %v204
    %v215 = vpop.f32.mrf.mxu0
    %v216 = vadd.f32 0.0, %v215
    %v217 = vpop.f32.mrf.mxu0
    %218 = vdwg.mxu0
    %v219 = vadd.f32 %v185, %v216
    %v220 = vxor.u32 %v219, 2147483648
    %v221 = vmul.f32 %v220, 1.442695
    %v222 = vpow.pop %v221
    %v223 = vadd.f32 %v222, 1.0
    %v224 = vrcp.pop %v223
    %v225 = vmul.f32 %v223, %v224
    %v226 = vsub.f32 1.0, %v225
    %v227 = vmul.f32 %v224, %v226
    %v228 = vadd.f32 %v224, %v227
    %vm229 = vweird.f32 %v223
    %vm230 = vweird.f32 %v224
    %vm231 = vmor %vm229, %vm230
    %v232 = vsel %vm231, %v224, %v228
    %v233 = vand.u32 2147483647, %v223
    %vm234 = vcmp.eq.f32.partialorder %v233, 8.507059e+37
    %v235 = vand.u32 %v223, 2147483648
    %v236 = vor.u32 1.1754944e-38, %v235
    %v237 = vsel %vm234, %v236, %v232
    %v238 = vmul.f32 1.0, %v237
    %v239 = vtanh.pop %v219
    %241 = vrot.lane.b32.xlu0 %v189, 32
    %v242 = vpop.permute.xlu0 %241
    %v244 = vmul.f32 %v238, %v242
    %246 = vrot.lane.b32.xlu0 %v239, 64
    %v247 = vpop.permute.xlu0 %246
    %v249 = vmul.f32 %v238, %v247
    %251 = vrot.lane.b32.xlu0 %v249, 32
    %v252 = vpop.permute.xlu0 %251
    %v254 = vadd.f32 %v244, %v252
    %v255 = vtanh.pop %v254
    %257 = vrot.lane.b32.xlu0 %v255, 64
    %v258 = vpop.permute.xlu0 %257
    %v260 = vmul.f32 %v238, %v258
    %262 = vrot.lane.b32.xlu0 %v260, 32
    %v263 = vpop.permute.xlu0 %262
    %265 = vst.msk [vmem:[%s186] sm:$0xff] %vm86, %v263
    %267 = vrot.lane.b32.xlu0 %v254, 96
    %v268 = vpop.permute.xlu0 %267
    %270 = vst.msk [vmem:[%s188] sm:$0xff] %vm86, %v268
    %271 = vrot.lane.b32.xlu0 %v260, 64
    %v272 = vpop.permute.xlu0 %271
    %s274 = scalar_lea.vmem [#allocation12], 56
    %vm275 = vcmask 523520
    %276 = vst.msk [vmem:[%s274] sm:$0xff] %vm275, %v272
    %s277 = scalar_lea.vmem [#allocation4], 8
    %v278 = vld [vmem:[%s277] sm:$0xff]
    %v279 = vld [vmem:[#allocation2] sm:$0xff]
    %v280 = vld [vmem:[#allocation3] sm:$0xff]
    %v281 = vpack.c.bf16 %v279, %v279
    %v283 = vsel %vm86, %v281, 0
    %285 = vmatpush.bf16.msra.mxu0 0
    %286 = vmatpush.bf16.msra.mxu0 0
    %287 = vmatpush.bf16.msra.mxu0 0
    %288 = vmatpush.bf16.msra.mxu0 0
    %289 = vmatpush.bf16.msra.mxu0 0
    %290 = vmatpush.bf16.msra.mxu0 0
    %291 = vmatpush.bf16.msra.mxu0 %v112
    %292 = vmatpush.bf16.msra.mxu0 %v111
    %293 = vmatmul.bf16.gmra.mxu0 %v283
    %v294 = vpop.f32.mrf.mxu0
    %v295 = vadd.f32 0.0, %v294
    %v296 = vpop.f32.mrf.mxu0
    %297 = vdwg.mxu0
    %v298 = vadd.f32 %v278, %v295
    %v299 = vxor.u32 %v298, 2147483648
    %v300 = vmul.f32 %v299, 1.442695
    %v301 = vpow.pop %v300
    %v302 = vadd.f32 %v301, 1.0
    %v303 = vrcp.pop %v302
    %v304 = vmul.f32 %v302, %v303
    %v305 = vsub.f32 1.0, %v304
    %v306 = vmul.f32 %v303, %v305
    %v307 = vadd.f32 %v303, %v306
    %vm308 = vweird.f32 %v302
    %vm309 = vweird.f32 %v303
    %vm310 = vmor %vm308, %vm309
    %v311 = vsel %vm310, %v303, %v307
    %v312 = vand.u32 2147483647, %v302
    %vm313 = vcmp.eq.f32.partialorder %v312, 8.507059e+37
    %v314 = vand.u32 %v302, 2147483648
    %v315 = vor.u32 1.1754944e-38, %v314
    %v316 = vsel %vm313, %v315, %v311
    %v317 = vmul.f32 1.0, %v316
    %v318 = vtanh.pop %v298
    %320 = vrot.lane.b32.xlu0 %v280, 32
    %v321 = vpop.permute.xlu0 %320
    %v323 = vmul.f32 %v317, %v321
    %325 = vrot.lane.b32.xlu0 %v318, 64
    %v326 = vpop.permute.xlu0 %325
    %v328 = vmul.f32 %v317, %v326
    %330 = vrot.lane.b32.xlu0 %v328, 32
    %v331 = vpop.permute.xlu0 %330
    %v333 = vadd.f32 %v323, %v331
    %v334 = vtanh.pop %v333
    %336 = vrot.lane.b32.xlu0 %v334, 64
    %v337 = vpop.permute.xlu0 %336
    %v339 = vmul.f32 %v317, %v337
    %341 = vrot.lane.b32.xlu0 %v339, 32
    %v342 = vpop.permute.xlu0 %341
    %344 = vst.msk [vmem:[#allocation2] sm:$0xff] %vm86, %v342
    %346 = vrot.lane.b32.xlu0 %v333, 96
    %v347 = vpop.permute.xlu0 %346
    %349 = vst.msk [vmem:[#allocation3] sm:$0xff] %vm86, %v347
    %s350 = scalar_lea.vmem [#allocation12], 8
    %351 = vst.msk [vmem:[%s350] sm:$0xff] %vm86, %v342
    %s352 = scalar_lea.vmem [#allocation7], 48
    %v353 = vld [vmem:[%s352] sm:$0xff]
    %v354 = vld [vmem:[%s186] sm:$0xff]
    %v355 = vld [vmem:[%s188] sm:$0xff]
    %v356 = vpack.c.bf16 %v354, %v354
    %v358 = vsel %vm86, %v356, 0
    %360 = vmatpush.bf16.msra.mxu0 0
    %361 = vmatpush.bf16.msra.mxu0 0
    %362 = vmatpush.bf16.msra.mxu0 0
    %363 = vmatpush.bf16.msra.mxu0 0
    %364 = vmatpush.bf16.msra.mxu0 0
    %365 = vmatpush.bf16.msra.mxu0 0
    %366 = vmatpush.bf16.msra.mxu0 %v200
    %367 = vmatpush.bf16.msra.mxu0 %v199
    %368 = vmatmul.bf16.gmra.mxu0 %v358
    %v369 = vpop.f32.mrf.mxu0
    %v370 = vadd.f32 0.0, %v369
    %v371 = vpop.f32.mrf.mxu0
    %372 = vdwg.mxu0
    %v373 = vadd.f32 %v353, %v370
    %v374 = vxor.u32 %v373, 2147483648
    %v375 = vmul.f32 %v374, 1.442695
    %v376 = vpow.pop %v375
    %v377 = vadd.f32 %v376, 1.0
    %v378 = vrcp.pop %v377
    %v379 = vmul.f32 %v377, %v378
    %v380 = vsub.f32 1.0, %v379
    %v381 = vmul.f32 %v378, %v380
    %v382 = vadd.f32 %v378, %v381
    %vm383 = vweird.f32 %v377
    %vm384 = vweird.f32 %v378
    %vm385 = vmor %vm383, %vm384
    %v386 = vsel %vm385, %v378, %v382
    %v387 = vand.u32 2147483647, %v377
    %vm388 = vcmp.eq.f32.partialorder %v387, 8.507059e+37
    %v389 = vand.u32 %v377, 2147483648
    %v390 = vor.u32 1.1754944e-38, %v389
    %v391 = vsel %vm388, %v390, %v386
    %v392 = vmul.f32 1.0, %v391
    %v393 = vtanh.pop %v373
    %395 = vrot.lane.b32.xlu0 %v355, 32
    %v396 = vpop.permute.xlu0 %395
    %v398 = vmul.f32 %v392, %v396
    %400 = vrot.lane.b32.xlu0 %v393, 64
    %v401 = vpop.permute.xlu0 %400
    %v403 = vmul.f32 %v392, %v401
    %405 = vrot.lane.b32.xlu0 %v403, 32
    %v406 = vpop.permute.xlu0 %405
    %v408 = vadd.f32 %v398, %v406
    %v409 = vtanh.pop %v408
    %411 = vrot.lane.b32.xlu0 %v409, 64
    %v412 = vpop.permute.xlu0 %411
    %v414 = vmul.f32 %v392, %v412
    %416 = vrot.lane.b32.xlu0 %v414, 32
    %v417 = vpop.permute.xlu0 %416
    %419 = vst.msk [vmem:[%s186] sm:$0xff] %vm86, %v417
    %421 = vrot.lane.b32.xlu0 %v408, 96
    %v422 = vpop.permute.xlu0 %421
    %424 = vst.msk [vmem:[%s188] sm:$0xff] %vm86, %v422
    %425 = vrot.lane.b32.xlu0 %v414, 64
    %v426 = vpop.permute.xlu0 %425
    %s428 = scalar_lea.vmem [#allocation12], 48
    %429 = vst.msk [vmem:[%s428] sm:$0xff] %vm275, %v426
    %s430 = scalar_lea.vmem [#allocation4], 16
    %v431 = vld [vmem:[%s430] sm:$0xff]
    %v432 = vld [vmem:[#allocation2] sm:$0xff]
    %v433 = vld [vmem:[#allocation3] sm:$0xff]
    %v434 = vpack.c.bf16 %v432, %v432
    %v436 = vsel %vm86, %v434, 0
    %438 = vmatpush.bf16.msra.mxu0 0
    %439 = vmatpush.bf16.msra.mxu0 0
    %440 = vmatpush.bf16.msra.mxu0 0
    %441 = vmatpush.bf16.msra.mxu0 0
    %442 = vmatpush.bf16.msra.mxu0 0
    %443 = vmatpush.bf16.msra.mxu0 0
    %444 = vmatpush.bf16.msra.mxu0 %v112
    %445 = vmatpush.bf16.msra.mxu0 %v111
    %446 = vmatmul.bf16.gmra.mxu0 %v436
    %v447 = vpop.f32.mrf.mxu0
    %v448 = vadd.f32 0.0, %v447
    %v449 = vpop.f32.mrf.mxu0
    %450 = vdwg.mxu0
    %v451 = vadd.f32 %v431, %v448
    %v452 = vxor.u32 %v451, 2147483648
    %v453 = vmul.f32 %v452, 1.442695
    %v454 = vpow.pop %v453
    %v455 = vadd.f32 %v454, 1.0
    %v456 = vrcp.pop %v455
    %v457 = vmul.f32 %v455, %v456
    %v458 = vsub.f32 1.0, %v457
    %v459 = vmul.f32 %v456, %v458
    %v460 = vadd.f32 %v456, %v459
    %vm461 = vweird.f32 %v455
    %vm462 = vweird.f32 %v456
    %vm463 = vmor %vm461, %vm462
    %v464 = vsel %vm463, %v456, %v460
    %v465 = vand.u32 2147483647, %v455
    %vm466 = vcmp.eq.f32.partialorder %v465, 8.507059e+37
    %v467 = vand.u32 %v455, 2147483648
    %v468 = vor.u32 1.1754944e-38, %v467
    %v469 = vsel %vm466, %v468, %v464
    %v470 = vmul.f32 1.0, %v469
    %v471 = vtanh.pop %v451
    %473 = vrot.lane.b32.xlu0 %v433, 32
    %v474 = vpop.permute.xlu0 %473
    %v476 = vmul.f32 %v470, %v474
    %478 = vrot.lane.b32.xlu0 %v471, 64
    %v479 = vpop.permute.xlu0 %478
    %v481 = vmul.f32 %v470, %v479
    %483 = vrot.lane.b32.xlu0 %v481, 32
    %v484 = vpop.permute.xlu0 %483
    %v486 = vadd.f32 %v476, %v484
    %v487 = vtanh.pop %v486
    %489 = vrot.lane.b32.xlu0 %v487, 64
    %v490 = vpop.permute.xlu0 %489
    %v492 = vmul.f32 %v470, %v490
    %494 = vrot.lane.b32.xlu0 %v492, 32
    %v495 = vpop.permute.xlu0 %494
    %497 = vst.msk [vmem:[#allocation2] sm:$0xff] %vm86, %v495
    %499 = vrot.lane.b32.xlu0 %v486, 96
    %v500 = vpop.permute.xlu0 %499
    %502 = vst.msk [vmem:[#allocation3] sm:$0xff] %vm86, %v500
    %s503 = scalar_lea.vmem [#allocation12], 16
    %504 = vst.msk [vmem:[%s503] sm:$0xff] %vm86, %v495
    %s505 = scalar_lea.vmem [#allocation7], 40
    %v506 = vld [vmem:[%s505] sm:$0xff]
    %v507 = vld [vmem:[%s186] sm:$0xff]
    %v508 = vld [vmem:[%s188] sm:$0xff]
    %v509 = vpack.c.bf16 %v507, %v507
    %v511 = vsel %vm86, %v509, 0
    %513 = vmatpush.bf16.msra.mxu0 0
    %514 = vmatpush.bf16.msra.mxu0 0
    %515 = vmatpush.bf16.msra.mxu0 0
    %516 = vmatpush.bf16.msra.mxu0 0
    %517 = vmatpush.bf16.msra.mxu0 0
    %518 = vmatpush.bf16.msra.mxu0 0
    %519 = vmatpush.bf16.msra.mxu0 %v200
    %520 = vmatpush.bf16.msra.mxu0 %v199
    %521 = vmatmul.bf16.gmra.mxu0 %v511
    %v522 = vpop.f32.mrf.mxu0
    %v523 = vadd.f32 0.0, %v522
    %v524 = vpop.f32.mrf.mxu0
    %525 = vdwg.mxu0
    %v526 = vadd.f32 %v506, %v523
    %v527 = vxor.u32 %v526, 2147483648
    %v528 = vmul.f32 %v527, 1.442695
    %v529 = vpow.pop %v528
    %v530 = vadd.f32 %v529, 1.0
    %v531 = vrcp.pop %v530
    %v532 = vmul.f32 %v530, %v531
    %v533 = vsub.f32 1.0, %v532
    %v534 = vmul.f32 %v531, %v533
    %v535 = vadd.f32 %v531, %v534
    %vm536 = vweird.f32 %v530
    %vm537 = vweird.f32 %v531
    %vm538 = vmor %vm536, %vm537
    %v539 = vsel %vm538, %v531, %v535
    %v540 = vand.u32 2147483647, %v530
    %vm541 = vcmp.eq.f32.partialorder %v540, 8.507059e+37
    %v542 = vand.u32 %v530, 2147483648
    %v543 = vor.u32 1.1754944e-38, %v542
    %v544 = vsel %vm541, %v543, %v539
    %v545 = vmul.f32 1.0, %v544
    %v546 = vtanh.pop %v526
    %548 = vrot.lane.b32.xlu0 %v508, 32
    %v549 = vpop.permute.xlu0 %548
    %v551 = vmul.f32 %v545, %v549
    %553 = vrot.lane.b32.xlu0 %v546, 64
    %v554 = vpop.permute.xlu0 %553
    %v556 = vmul.f32 %v545, %v554
    %558 = vrot.lane.b32.xlu0 %v556, 32
    %v559 = vpop.permute.xlu0 %558
    %v561 = vadd.f32 %v551, %v559
    %v562 = vtanh.pop %v561
    %564 = vrot.lane.b32.xlu0 %v562, 64
    %v565 = vpop.permute.xlu0 %564
    %v567 = vmul.f32 %v545, %v565
    %569 = vrot.lane.b32.xlu0 %v567, 32
    %v570 = vpop.permute.xlu0 %569
    %572 = vst.msk [vmem:[%s186] sm:$0xff] %vm86, %v570
    %574 = vrot.lane.b32.xlu0 %v561, 96
    %v575 = vpop.permute.xlu0 %574
    %577 = vst.msk [vmem:[%s188] sm:$0xff] %vm86, %v575
    %578 = vrot.lane.b32.xlu0 %v567, 64
    %v579 = vpop.permute.xlu0 %578
    %s581 = scalar_lea.vmem [#allocation12], 40
    %582 = vst.msk [vmem:[%s581] sm:$0xff] %vm275, %v579
    %s583 = scalar_lea.vmem [#allocation4], 24
    %v584 = vld [vmem:[%s583] sm:$0xff]
    %v585 = vld [vmem:[#allocation2] sm:$0xff]
    %v586 = vld [vmem:[#allocation3] sm:$0xff]
    %v587 = vpack.c.bf16 %v585, %v585
    %v589 = vsel %vm86, %v587, 0
    %591 = vmatpush.bf16.msra.mxu0 0
    %592 = vmatpush.bf16.msra.mxu0 0
    %593 = vmatpush.bf16.msra.mxu0 0
    %594 = vmatpush.bf16.msra.mxu0 0
    %595 = vmatpush.bf16.msra.mxu0 0
    %596 = vmatpush.bf16.msra.mxu0 0
    %597 = vmatpush.bf16.msra.mxu0 %v112
    %598 = vmatpush.bf16.msra.mxu0 %v111
    %599 = vmatmul.bf16.gmra.mxu0 %v589
    %v600 = vpop.f32.mrf.mxu0
    %v601 = vadd.f32 0.0, %v600
    %v602 = vpop.f32.mrf.mxu0
    %603 = vdwg.mxu0
    %v604 = vadd.f32 %v584, %v601
    %v605 = vxor.u32 %v604, 2147483648
    %v606 = vmul.f32 %v605, 1.442695
    %v607 = vpow.pop %v606
    %v608 = vadd.f32 %v607, 1.0
    %v609 = vrcp.pop %v608
    %v610 = vmul.f32 %v608, %v609
    %v611 = vsub.f32 1.0, %v610
    %v612 = vmul.f32 %v609, %v611
    %v613 = vadd.f32 %v609, %v612
    %vm614 = vweird.f32 %v608
    %vm615 = vweird.f32 %v609
    %vm616 = vmor %vm614, %vm615
    %v617 = vsel %vm616, %v609, %v613
    %v618 = vand.u32 2147483647, %v608
    %vm619 = vcmp.eq.f32.partialorder %v618, 8.507059e+37
    %v620 = vand.u32 %v608, 2147483648
    %v621 = vor.u32 1.1754944e-38, %v620
    %v622 = vsel %vm619, %v621, %v617
    %v623 = vmul.f32 1.0, %v622
    %v624 = vtanh.pop %v604
    %626 = vrot.lane.b32.xlu0 %v586, 32
    %v627 = vpop.permute.xlu0 %626
    %v629 = vmul.f32 %v623, %v627
    %631 = vrot.lane.b32.xlu0 %v624, 64
    %v632 = vpop.permute.xlu0 %631
    %v634 = vmul.f32 %v623, %v632
    %636 = vrot.lane.b32.xlu0 %v634, 32
    %v637 = vpop.permute.xlu0 %636
    %v639 = vadd.f32 %v629, %v637
    %v640 = vtanh.pop %v639
    %642 = vrot.lane.b32.xlu0 %v640, 64
    %v643 = vpop.permute.xlu0 %642
    %v645 = vmul.f32 %v623, %v643
    %647 = vrot.lane.b32.xlu0 %v645, 32
    %v648 = vpop.permute.xlu0 %647
    %650 = vst.msk [vmem:[#allocation2] sm:$0xff] %vm86, %v648
    %652 = vrot.lane.b32.xlu0 %v639, 96
    %v653 = vpop.permute.xlu0 %652
    %655 = vst.msk [vmem:[#allocation3] sm:$0xff] %vm86, %v653
    %s656 = scalar_lea.vmem [#allocation12], 24
    %657 = vst.msk [vmem:[%s656] sm:$0xff] %vm86, %v648
    %s658 = scalar_lea.vmem [#allocation7], 32
    %v659 = vld [vmem:[%s658] sm:$0xff]
    %v660 = vld [vmem:[%s186] sm:$0xff]
    %v661 = vld [vmem:[%s188] sm:$0xff]
    %v662 = vpack.c.bf16 %v660, %v660
    %v664 = vsel %vm86, %v662, 0
    %666 = vmatpush.bf16.msra.mxu0 0
    %667 = vmatpush.bf16.msra.mxu0 0
    %668 = vmatpush.bf16.msra.mxu0 0
    %669 = vmatpush.bf16.msra.mxu0 0
    %670 = vmatpush.bf16.msra.mxu0 0
    %671 = vmatpush.bf16.msra.mxu0 0
    %672 = vmatpush.bf16.msra.mxu0 %v200
    %673 = vmatpush.bf16.msra.mxu0 %v199
    %674 = vmatmul.bf16.gmra.mxu0 %v664
    %v675 = vpop.f32.mrf.mxu0
    %v676 = vadd.f32 0.0, %v675
    %v677 = vpop.f32.mrf.mxu0
    %678 = vdwg.mxu0
    %v679 = vadd.f32 %v659, %v676
    %v680 = vxor.u32 %v679, 2147483648
    %v681 = vmul.f32 %v680, 1.442695
    %v682 = vpow.pop %v681
    %v683 = vadd.f32 %v682, 1.0
    %v684 = vrcp.pop %v683
    %v685 = vmul.f32 %v683, %v684
    %v686 = vsub.f32 1.0, %v685
    %v687 = vmul.f32 %v684, %v686
    %v688 = vadd.f32 %v684, %v687
    %vm689 = vweird.f32 %v683
    %vm690 = vweird.f32 %v684
    %vm691 = vmor %vm689, %vm690
    %v692 = vsel %vm691, %v684, %v688
    %v693 = vand.u32 2147483647, %v683
    %vm694 = vcmp.eq.f32.partialorder %v693, 8.507059e+37
    %v695 = vand.u32 %v683, 2147483648
    %v696 = vor.u32 1.1754944e-38, %v695
    %v697 = vsel %vm694, %v696, %v692
    %v698 = vmul.f32 1.0, %v697
    %v699 = vtanh.pop %v679
    %701 = vrot.lane.b32.xlu0 %v661, 32
    %v702 = vpop.permute.xlu0 %701
    %v704 = vmul.f32 %v698, %v702
    %706 = vrot.lane.b32.xlu0 %v699, 64
    %v707 = vpop.permute.xlu0 %706
    %v709 = vmul.f32 %v698, %v707
    %711 = vrot.lane.b32.xlu0 %v709, 32
    %v712 = vpop.permute.xlu0 %711
    %v714 = vadd.f32 %v704, %v712
    %v715 = vtanh.pop %v714
    %717 = vrot.lane.b32.xlu0 %v715, 64
    %v718 = vpop.permute.xlu0 %717
    %v720 = vmul.f32 %v698, %v718
    %722 = vrot.lane.b32.xlu0 %v720, 32
    %v723 = vpop.permute.xlu0 %722
    %725 = vst.msk [vmem:[%s186] sm:$0xff] %vm86, %v723
    %727 = vrot.lane.b32.xlu0 %v714, 96
    %v728 = vpop.permute.xlu0 %727
    %730 = vst.msk [vmem:[%s188] sm:$0xff] %vm86, %v728
    %731 = vrot.lane.b32.xlu0 %v720, 64
    %v732 = vpop.permute.xlu0 %731
    %s734 = scalar_lea.vmem [#allocation12], 32
    %735 = vst.msk [vmem:[%s734] sm:$0xff] %vm275, %v732
    %s736 = scalar_lea.vmem [#allocation4], 32
    %v737 = vld [vmem:[%s736] sm:$0xff]
    %v738 = vld [vmem:[#allocation2] sm:$0xff]
    %v739 = vld [vmem:[#allocation3] sm:$0xff]
    %v740 = vpack.c.bf16 %v738, %v738
    %v742 = vsel %vm86, %v740, 0
    %744 = vmatpush.bf16.msra.mxu0 0
    %745 = vmatpush.bf16.msra.mxu0 0
    %746 = vmatpush.bf16.msra.mxu0 0
    %747 = vmatpush.bf16.msra.mxu0 0
    %748 = vmatpush.bf16.msra.mxu0 0
    %749 = vmatpush.bf16.msra.mxu0 0
    %750 = vmatpush.bf16.msra.mxu0 %v112
    %751 = vmatpush.bf16.msra.mxu0 %v111
    %752 = vmatmul.bf16.gmra.mxu0 %v742
    %v753 = vpop.f32.mrf.mxu0
    %v754 = vadd.f32 0.0, %v753
    %v755 = vpop.f32.mrf.mxu0
    %756 = vdwg.mxu0
    %v757 = vadd.f32 %v737, %v754
    %v758 = vxor.u32 %v757, 2147483648
    %v759 = vmul.f32 %v758, 1.442695
    %v760 = vpow.pop %v759
    %v761 = vadd.f32 %v760, 1.0
    %v762 = vrcp.pop %v761
    %v763 = vmul.f32 %v761, %v762
    %v764 = vsub.f32 1.0, %v763
    %v765 = vmul.f32 %v762, %v764
    %v766 = vadd.f32 %v762, %v765
    %vm767 = vweird.f32 %v761
    %vm768 = vweird.f32 %v762
    %vm769 = vmor %vm767, %vm768
    %v770 = vsel %vm769, %v762, %v766
    %v771 = vand.u32 2147483647, %v761
    %vm772 = vcmp.eq.f32.partialorder %v771, 8.507059e+37
    %v773 = vand.u32 %v761, 2147483648
    %v774 = vor.u32 1.1754944e-38, %v773
    %v775 = vsel %vm772, %v774, %v770
    %v776 = vmul.f32 1.0, %v775
    %v777 = vtanh.pop %v757
    %779 = vrot.lane.b32.xlu0 %v739, 32
    %v780 = vpop.permute.xlu0 %779
    %v782 = vmul.f32 %v776, %v780
    %784 = vrot.lane.b32.xlu0 %v777, 64
    %v785 = vpop.permute.xlu0 %784
    %v787 = vmul.f32 %v776, %v785
    %789 = vrot.lane.b32.xlu0 %v787, 32
    %v790 = vpop.permute.xlu0 %789
    %v792 = vadd.f32 %v782, %v790
    %v793 = vtanh.pop %v792
    %795 = vrot.lane.b32.xlu0 %v793, 64
    %v796 = vpop.permute.xlu0 %795
    %v798 = vmul.f32 %v776, %v796
    %800 = vrot.lane.b32.xlu0 %v798, 32
    %v801 = vpop.permute.xlu0 %800
    %803 = vst.msk [vmem:[#allocation2] sm:$0xff] %vm86, %v801
    %805 = vrot.lane.b32.xlu0 %v792, 96
    %v806 = vpop.permute.xlu0 %805
    %808 = vst.msk [vmem:[#allocation3] sm:$0xff] %vm86, %v806
    %809 = vst.msk [vmem:[%s734] sm:$0xff] %vm86, %v801
    %s810 = scalar_lea.vmem [#allocation7], 24
    %v811 = vld [vmem:[%s810] sm:$0xff]
    %v812 = vld [vmem:[%s186] sm:$0xff]
    %v813 = vld [vmem:[%s188] sm:$0xff]
    %v814 = vpack.c.bf16 %v812, %v812
    %v816 = vsel %vm86, %v814, 0
    %818 = vmatpush.bf16.msra.mxu0 0
    %819 = vmatpush.bf16.msra.mxu0 0
    %820 = vmatpush.bf16.msra.mxu0 0
    %821 = vmatpush.bf16.msra.mxu0 0
    %822 = vmatpush.bf16.msra.mxu0 0
    %823 = vmatpush.bf16.msra.mxu0 0
    %824 = vmatpush.bf16.msra.mxu0 %v200
    %825 = vmatpush.bf16.msra.mxu0 %v199
    %826 = vmatmul.bf16.gmra.mxu0 %v816
    %v827 = vpop.f32.mrf.mxu0
    %v828 = vadd.f32 0.0, %v827
    %v829 = vpop.f32.mrf.mxu0
    %830 = vdwg.mxu0
    %v831 = vadd.f32 %v811, %v828
    %v832 = vxor.u32 %v831, 2147483648
    %v833 = vmul.f32 %v832, 1.442695
    %v834 = vpow.pop %v833
    %v835 = vadd.f32 %v834, 1.0
    %v836 = vrcp.pop %v835
    %v837 = vmul.f32 %v835, %v836
    %v838 = vsub.f32 1.0, %v837
    %v839 = vmul.f32 %v836, %v838
    %v840 = vadd.f32 %v836, %v839
    %vm841 = vweird.f32 %v835
    %vm842 = vweird.f32 %v836
    %vm843 = vmor %vm841, %vm842
    %v844 = vsel %vm843, %v836, %v840
    %v845 = vand.u32 2147483647, %v835
    %vm846 = vcmp.eq.f32.partialorder %v845, 8.507059e+37
    %v847 = vand.u32 %v835, 2147483648
    %v848 = vor.u32 1.1754944e-38, %v847
    %v849 = vsel %vm846, %v848, %v844
    %v850 = vmul.f32 1.0, %v849
    %v851 = vtanh.pop %v831
    %853 = vrot.lane.b32.xlu0 %v813, 32
    %v854 = vpop.permute.xlu0 %853
    %v856 = vmul.f32 %v850, %v854
    %858 = vrot.lane.b32.xlu0 %v851, 64
    %v859 = vpop.permute.xlu0 %858
    %v861 = vmul.f32 %v850, %v859
    %863 = vrot.lane.b32.xlu0 %v861, 32
    %v864 = vpop.permute.xlu0 %863
    %v866 = vadd.f32 %v856, %v864
    %v867 = vtanh.pop %v866
    %869 = vrot.lane.b32.xlu0 %v867, 64
    %v870 = vpop.permute.xlu0 %869
    %v872 = vmul.f32 %v850, %v870
    %874 = vrot.lane.b32.xlu0 %v872, 32
    %v875 = vpop.permute.xlu0 %874
    %877 = vst.msk [vmem:[%s186] sm:$0xff] %vm86, %v875
    %879 = vrot.lane.b32.xlu0 %v866, 96
    %v880 = vpop.permute.xlu0 %879
    %882 = vst.msk [vmem:[%s188] sm:$0xff] %vm86, %v880
    %883 = vrot.lane.b32.xlu0 %v872, 64
    %v884 = vpop.permute.xlu0 %883
    %886 = vst.msk [vmem:[%s656] sm:$0xff] %vm275, %v884
    %s887 = scalar_lea.vmem [#allocation4], 40
    %v888 = vld [vmem:[%s887] sm:$0xff]
    %v889 = vld [vmem:[#allocation2] sm:$0xff]
    %v890 = vld [vmem:[#allocation3] sm:$0xff]
    %v891 = vpack.c.bf16 %v889, %v889
    %v893 = vsel %vm86, %v891, 0
    %895 = vmatpush.bf16.msra.mxu0 0
    %896 = vmatpush.bf16.msra.mxu0 0
    %897 = vmatpush.bf16.msra.mxu0 0
    %898 = vmatpush.bf16.msra.mxu0 0
    %899 = vmatpush.bf16.msra.mxu0 0
    %900 = vmatpush.bf16.msra.mxu0 0
    %901 = vmatpush.bf16.msra.mxu0 %v112
    %902 = vmatpush.bf16.msra.mxu0 %v111
    %903 = vmatmul.bf16.gmra.mxu0 %v893
    %v904 = vpop.f32.mrf.mxu0
    %v905 = vadd.f32 0.0, %v904
    %v906 = vpop.f32.mrf.mxu0
    %907 = vdwg.mxu0
    %v908 = vadd.f32 %v888, %v905
    %v909 = vxor.u32 %v908, 2147483648
    %v910 = vmul.f32 %v909, 1.442695
    %v911 = vpow.pop %v910
    %v912 = vadd.f32 %v911, 1.0
    %v913 = vrcp.pop %v912
    %v914 = vmul.f32 %v912, %v913
    %v915 = vsub.f32 1.0, %v914
    %v916 = vmul.f32 %v913, %v915
    %v917 = vadd.f32 %v913, %v916
    %vm918 = vweird.f32 %v912
    %vm919 = vweird.f32 %v913
    %vm920 = vmor %vm918, %vm919
    %v921 = vsel %vm920, %v913, %v917
    %v922 = vand.u32 2147483647, %v912
    %vm923 = vcmp.eq.f32.partialorder %v922, 8.507059e+37
    %v924 = vand.u32 %v912, 2147483648
    %v925 = vor.u32 1.1754944e-38, %v924
    %v926 = vsel %vm923, %v925, %v921
    %v927 = vmul.f32 1.0, %v926
    %v928 = vtanh.pop %v908
    %930 = vrot.lane.b32.xlu0 %v890, 32
    %v931 = vpop.permute.xlu0 %930
    %v933 = vmul.f32 %v927, %v931
    %935 = vrot.lane.b32.xlu0 %v928, 64
    %v936 = vpop.permute.xlu0 %935
    %v938 = vmul.f32 %v927, %v936
    %940 = vrot.lane.b32.xlu0 %v938, 32
    %v941 = vpop.permute.xlu0 %940
    %v943 = vadd.f32 %v933, %v941
    %v944 = vtanh.pop %v943
    %946 = vrot.lane.b32.xlu0 %v944, 64
    %v947 = vpop.permute.xlu0 %946
    %v949 = vmul.f32 %v927, %v947
    %951 = vrot.lane.b32.xlu0 %v949, 32
    %v952 = vpop.permute.xlu0 %951
    %954 = vst.msk [vmem:[#allocation2] sm:$0xff] %vm86, %v952
    %956 = vrot.lane.b32.xlu0 %v943, 96
    %v957 = vpop.permute.xlu0 %956
    %959 = vst.msk [vmem:[#allocation3] sm:$0xff] %vm86, %v957
    %960 = vst.msk [vmem:[%s581] sm:$0xff] %vm86, %v952
    %s961 = scalar_lea.vmem [#allocation7], 16
    %v962 = vld [vmem:[%s961] sm:$0xff]
    %v963 = vld [vmem:[%s186] sm:$0xff]
    %v964 = vld [vmem:[%s188] sm:$0xff]
    %v965 = vpack.c.bf16 %v963, %v963
    %v967 = vsel %vm86, %v965, 0
    %969 = vmatpush.bf16.msra.mxu0 0
    %970 = vmatpush.bf16.msra.mxu0 0
    %971 = vmatpush.bf16.msra.mxu0 0
    %972 = vmatpush.bf16.msra.mxu0 0
    %973 = vmatpush.bf16.msra.mxu0 0
    %974 = vmatpush.bf16.msra.mxu0 0
    %975 = vmatpush.bf16.msra.mxu0 %v200
    %976 = vmatpush.bf16.msra.mxu0 %v199
    %977 = vmatmul.bf16.gmra.mxu0 %v967
    %v978 = vpop.f32.mrf.mxu0
    %v979 = vadd.f32 0.0, %v978
    %v980 = vpop.f32.mrf.mxu0
    %981 = vdwg.mxu0
    %v982 = vadd.f32 %v962, %v979
    %v983 = vxor.u32 %v982, 2147483648
    %v984 = vmul.f32 %v983, 1.442695
    %v985 = vpow.pop %v984
    %v986 = vadd.f32 %v985, 1.0
    %v987 = vrcp.pop %v986
    %v988 = vmul.f32 %v986, %v987
    %v989 = vsub.f32 1.0, %v988
    %v990 = vmul.f32 %v987, %v989
    %v991 = vadd.f32 %v987, %v990
    %vm992 = vweird.f32 %v986
    %vm993 = vweird.f32 %v987
    %vm994 = vmor %vm992, %vm993
    %v995 = vsel %vm994, %v987, %v991
    %v996 = vand.u32 2147483647, %v986
    %vm997 = vcmp.eq.f32.partialorder %v996, 8.507059e+37
    %v998 = vand.u32 %v986, 2147483648
    %v999 = vor.u32 1.1754944e-38, %v998
    %v1000 = vsel %vm997, %v999, %v995
    %v1001 = vmul.f32 1.0, %v1000
    %v1002 = vtanh.pop %v982
    %1004 = vrot.lane.b32.xlu0 %v964, 32
    %v1005 = vpop.permute.xlu0 %1004
    %v1007 = vmul.f32 %v1001, %v1005
    %1009 = vrot.lane.b32.xlu0 %v1002, 64
    %v1010 = vpop.permute.xlu0 %1009
    %v1012 = vmul.f32 %v1001, %v1010
    %1014 = vrot.lane.b32.xlu0 %v1012, 32
    %v1015 = vpop.permute.xlu0 %1014
    %v1017 = vadd.f32 %v1007, %v1015
    %v1018 = vtanh.pop %v1017
    %1020 = vrot.lane.b32.xlu0 %v1018, 64
    %v1021 = vpop.permute.xlu0 %1020
    %v1023 = vmul.f32 %v1001, %v1021
    %1025 = vrot.lane.b32.xlu0 %v1023, 32
    %v1026 = vpop.permute.xlu0 %1025
    %1028 = vst.msk [vmem:[%s186] sm:$0xff] %vm86, %v1026
    %1030 = vrot.lane.b32.xlu0 %v1017, 96
    %v1031 = vpop.permute.xlu0 %1030
    %1033 = vst.msk [vmem:[%s188] sm:$0xff] %vm86, %v1031
    %1034 = vrot.lane.b32.xlu0 %v1023, 64
    %v1035 = vpop.permute.xlu0 %1034
    %1037 = vst.msk [vmem:[%s503] sm:$0xff] %vm275, %v1035
    %s1038 = scalar_lea.vmem [#allocation4], 48
    %v1039 = vld [vmem:[%s1038] sm:$0xff]
    %v1040 = vld [vmem:[#allocation2] sm:$0xff]
    %v1041 = vld [vmem:[#allocation3] sm:$0xff]
    %v1042 = vpack.c.bf16 %v1040, %v1040
    %v1044 = vsel %vm86, %v1042, 0
    %1046 = vmatpush.bf16.msra.mxu0 0
    %1047 = vmatpush.bf16.msra.mxu0 0
    %1048 = vmatpush.bf16.msra.mxu0 0
    %1049 = vmatpush.bf16.msra.mxu0 0
    %1050 = vmatpush.bf16.msra.mxu0 0
    %1051 = vmatpush.bf16.msra.mxu0 0
    %1052 = vmatpush.bf16.msra.mxu0 %v112
    %1053 = vmatpush.bf16.msra.mxu0 %v111
    %1054 = vmatmul.bf16.gmra.mxu0 %v1044
    %v1055 = vpop.f32.mrf.mxu0
    %v1056 = vadd.f32 0.0, %v1055
    %v1057 = vpop.f32.mrf.mxu0
    %1058 = vdwg.mxu0
    %v1059 = vadd.f32 %v1039, %v1056
    %v1060 = vxor.u32 %v1059, 2147483648
    %v1061 = vmul.f32 %v1060, 1.442695
    %v1062 = vpow.pop %v1061
    %v1063 = vadd.f32 %v1062, 1.0
    %v1064 = vrcp.pop %v1063
    %v1065 = vmul.f32 %v1063, %v1064
    %v1066 = vsub.f32 1.0, %v1065
    %v1067 = vmul.f32 %v1064, %v1066
    %v1068 = vadd.f32 %v1064, %v1067
    %vm1069 = vweird.f32 %v1063
    %vm1070 = vweird.f32 %v1064
    %vm1071 = vmor %vm1069, %vm1070
    %v1072 = vsel %vm1071, %v1064, %v1068
    %v1073 = vand.u32 2147483647, %v1063
    %vm1074 = vcmp.eq.f32.partialorder %v1073, 8.507059e+37
    %v1075 = vand.u32 %v1063, 2147483648
    %v1076 = vor.u32 1.1754944e-38, %v1075
    %v1077 = vsel %vm1074, %v1076, %v1072
    %v1078 = vmul.f32 1.0, %v1077
    %v1079 = vtanh.pop %v1059
    %1081 = vrot.lane.b32.xlu0 %v1041, 32
    %v1082 = vpop.permute.xlu0 %1081
    %v1084 = vmul.f32 %v1078, %v1082
    %1086 = vrot.lane.b32.xlu0 %v1079, 64
    %v1087 = vpop.permute.xlu0 %1086
    %v1089 = vmul.f32 %v1078, %v1087
    %1091 = vrot.lane.b32.xlu0 %v1089, 32
    %v1092 = vpop.permute.xlu0 %1091
    %v1094 = vadd.f32 %v1084, %v1092
    %v1095 = vtanh.pop %v1094
    %1097 = vrot.lane.b32.xlu0 %v1095, 64
    %v1098 = vpop.permute.xlu0 %1097
    %v1100 = vmul.f32 %v1078, %v1098
    %1102 = vrot.lane.b32.xlu0 %v1100, 32
    %v1103 = vpop.permute.xlu0 %1102
    %1105 = vst.msk [vmem:[#allocation2] sm:$0xff] %vm86, %v1103
    %1107 = vrot.lane.b32.xlu0 %v1094, 96
    %v1108 = vpop.permute.xlu0 %1107
    %1110 = vst.msk [vmem:[#allocation3] sm:$0xff] %vm86, %v1108
    %1111 = vst.msk [vmem:[%s428] sm:$0xff] %vm86, %v1103
    %s1112 = scalar_lea.vmem [#allocation7], 8
    %v1113 = vld [vmem:[%s1112] sm:$0xff]
    %v1114 = vld [vmem:[%s186] sm:$0xff]
    %v1115 = vld [vmem:[%s188] sm:$0xff]
    %v1116 = vpack.c.bf16 %v1114, %v1114
    %v1118 = vsel %vm86, %v1116, 0
    %1120 = vmatpush.bf16.msra.mxu0 0
    %1121 = vmatpush.bf16.msra.mxu0 0
    %1122 = vmatpush.bf16.msra.mxu0 0
    %1123 = vmatpush.bf16.msra.mxu0 0
    %1124 = vmatpush.bf16.msra.mxu0 0
    %1125 = vmatpush.bf16.msra.mxu0 0
    %1126 = vmatpush.bf16.msra.mxu0 %v200
    %1127 = vmatpush.bf16.msra.mxu0 %v199
    %1128 = vmatmul.bf16.gmra.mxu0 %v1118
    %v1129 = vpop.f32.mrf.mxu0
    %v1130 = vadd.f32 0.0, %v1129
    %v1131 = vpop.f32.mrf.mxu0
    %1132 = vdwg.mxu0
    %v1133 = vadd.f32 %v1113, %v1130
    %v1134 = vxor.u32 %v1133, 2147483648
    %v1135 = vmul.f32 %v1134, 1.442695
    %v1136 = vpow.pop %v1135
    %v1137 = vadd.f32 %v1136, 1.0
    %v1138 = vrcp.pop %v1137
    %v1139 = vmul.f32 %v1137, %v1138
    %v1140 = vsub.f32 1.0, %v1139
    %v1141 = vmul.f32 %v1138, %v1140
    %v1142 = vadd.f32 %v1138, %v1141
    %vm1143 = vweird.f32 %v1137
    %vm1144 = vweird.f32 %v1138
    %vm1145 = vmor %vm1143, %vm1144
    %v1146 = vsel %vm1145, %v1138, %v1142
    %v1147 = vand.u32 2147483647, %v1137
    %vm1148 = vcmp.eq.f32.partialorder %v1147, 8.507059e+37
    %v1149 = vand.u32 %v1137, 2147483648
    %v1150 = vor.u32 1.1754944e-38, %v1149
    %v1151 = vsel %vm1148, %v1150, %v1146
    %v1152 = vmul.f32 1.0, %v1151
    %v1153 = vtanh.pop %v1133
    %1155 = vrot.lane.b32.xlu0 %v1115, 32
    %v1156 = vpop.permute.xlu0 %1155
    %v1158 = vmul.f32 %v1152, %v1156
    %1160 = vrot.lane.b32.xlu0 %v1153, 64
    %v1161 = vpop.permute.xlu0 %1160
    %v1163 = vmul.f32 %v1152, %v1161
    %1165 = vrot.lane.b32.xlu0 %v1163, 32
    %v1166 = vpop.permute.xlu0 %1165
    %v1168 = vadd.f32 %v1158, %v1166
    %v1169 = vtanh.pop %v1168
    %1171 = vrot.lane.b32.xlu0 %v1169, 64
    %v1172 = vpop.permute.xlu0 %1171
    %v1174 = vmul.f32 %v1152, %v1172
    %1176 = vrot.lane.b32.xlu0 %v1174, 32
    %v1177 = vpop.permute.xlu0 %1176
    %1179 = vst.msk [vmem:[%s186] sm:$0xff] %vm86, %v1177
    %1181 = vrot.lane.b32.xlu0 %v1168, 96
    %v1182 = vpop.permute.xlu0 %1181
    %1184 = vst.msk [vmem:[%s188] sm:$0xff] %vm86, %v1182
    %1185 = vrot.lane.b32.xlu0 %v1174, 64
    %v1186 = vpop.permute.xlu0 %1185
    %1188 = vst.msk [vmem:[%s350] sm:$0xff] %vm275, %v1186
    %s1189 = scalar_lea.vmem [#allocation4], 56
    %v1190 = vld [vmem:[%s1189] sm:$0xff]
    %v1191 = vld [vmem:[#allocation2] sm:$0xff]
    %v1192 = vld [vmem:[#allocation3] sm:$0xff]
    %v1193 = vpack.c.bf16 %v1191, %v1191
    %v1195 = vsel %vm86, %v1193, 0
    %1197 = vmatpush.bf16.msra.mxu0 0
    %1198 = vmatpush.bf16.msra.mxu0 0
    %1199 = vmatpush.bf16.msra.mxu0 0
    %1200 = vmatpush.bf16.msra.mxu0 0
    %1201 = vmatpush.bf16.msra.mxu0 0
    %1202 = vmatpush.bf16.msra.mxu0 0
    %1203 = vmatpush.bf16.msra.mxu0 %v112
    %1204 = vmatpush.bf16.msra.mxu0 %v111
    %1205 = vmatmul.bf16.gmra.mxu0 %v1195
    %v1206 = vpop.f32.mrf.mxu0
    %v1207 = vadd.f32 0.0, %v1206
    %v1208 = vpop.f32.mrf.mxu0
    %1209 = vdwg.mxu0
    %v1210 = vadd.f32 %v1190, %v1207
    %v1211 = vxor.u32 %v1210, 2147483648
    %v1212 = vmul.f32 %v1211, 1.442695
    %v1213 = vpow.pop %v1212
    %v1214 = vadd.f32 %v1213, 1.0
    %v1215 = vrcp.pop %v1214
    %v1216 = vmul.f32 %v1214, %v1215
    %v1217 = vsub.f32 1.0, %v1216
    %v1218 = vmul.f32 %v1215, %v1217
    %v1219 = vadd.f32 %v1215, %v1218
    %vm1220 = vweird.f32 %v1214
    %vm1221 = vweird.f32 %v1215
    %vm1222 = vmor %vm1220, %vm1221
    %v1223 = vsel %vm1222, %v1215, %v1219
    %v1224 = vand.u32 2147483647, %v1214
    %vm1225 = vcmp.eq.f32.partialorder %v1224, 8.507059e+37
    %v1226 = vand.u32 %v1214, 2147483648
    %v1227 = vor.u32 1.1754944e-38, %v1226
    %v1228 = vsel %vm1225, %v1227, %v1223
    %v1229 = vmul.f32 1.0, %v1228
    %v1230 = vtanh.pop %v1210
    %1232 = vrot.lane.b32.xlu0 %v1192, 32
    %v1233 = vpop.permute.xlu0 %1232
    %v1235 = vmul.f32 %v1229, %v1233
    %1237 = vrot.lane.b32.xlu0 %v1230, 64
    %v1238 = vpop.permute.xlu0 %1237
    %v1240 = vmul.f32 %v1229, %v1238
    %1242 = vrot.lane.b32.xlu0 %v1240, 32
    %v1243 = vpop.permute.xlu0 %1242
    %v1245 = vadd.f32 %v1235, %v1243
    %v1246 = vtanh.pop %v1245
    %1248 = vrot.lane.b32.xlu0 %v1246, 64
    %v1249 = vpop.permute.xlu0 %1248
    %v1251 = vmul.f32 %v1229, %v1249
    %1253 = vrot.lane.b32.xlu0 %v1251, 32
    %v1254 = vpop.permute.xlu0 %1253
    %1256 = vst.msk [vmem:[#allocation2] sm:$0xff] %vm86, %v1254
    %1258 = vrot.lane.b32.xlu0 %v1245, 96
    %v1259 = vpop.permute.xlu0 %1258
    %1261 = vst.msk [vmem:[#allocation3] sm:$0xff] %vm86, %v1259
    %1262 = vst.msk [vmem:[%s274] sm:$0xff] %vm86, %v1254
    %v1263 = vld [vmem:[#allocation7] sm:$0xff]
    %v1264 = vld [vmem:[%s186] sm:$0xff]
    %v1265 = vld [vmem:[%s188] sm:$0xff]
    %v1266 = vpack.c.bf16 %v1264, %v1264
    %v1268 = vsel %vm86, %v1266, 0
    %1270 = vmatpush.bf16.msra.mxu0 0
    %1271 = vmatpush.bf16.msra.mxu0 0
    %1272 = vmatpush.bf16.msra.mxu0 0
    %1273 = vmatpush.bf16.msra.mxu0 0
    %1274 = vmatpush.bf16.msra.mxu0 0
    %1275 = vmatpush.bf16.msra.mxu0 0
    %1276 = vmatpush.bf16.msra.mxu0 %v200
    %1277 = vmatpush.bf16.msra.mxu0 %v199
    %1278 = vmatmul.bf16.gmra.mxu0 %v1268
    %v1279 = vpop.f32.mrf.mxu0
    %v1280 = vadd.f32 0.0, %v1279
    %v1281 = vpop.f32.mrf.mxu0
    %1282 = vdwg.mxu0
    %v1283 = vadd.f32 %v1263, %v1280
    %v1284 = vxor.u32 %v1283, 2147483648
    %v1285 = vmul.f32 %v1284, 1.442695
    %v1286 = vpow.pop %v1285
    %v1287 = vadd.f32 %v1286, 1.0
    %v1288 = vrcp.pop %v1287
    %v1289 = vmul.f32 %v1287, %v1288
    %v1290 = vsub.f32 1.0, %v1289
    %v1291 = vmul.f32 %v1288, %v1290
    %v1292 = vadd.f32 %v1288, %v1291
    %vm1293 = vweird.f32 %v1287
    %vm1294 = vweird.f32 %v1288
    %vm1295 = vmor %vm1293, %vm1294
    %v1296 = vsel %vm1295, %v1288, %v1292
    %v1297 = vand.u32 2147483647, %v1287
    %vm1298 = vcmp.eq.f32.partialorder %v1297, 8.507059e+37
    %v1299 = vand.u32 %v1287, 2147483648
    %v1300 = vor.u32 1.1754944e-38, %v1299
    %v1301 = vsel %vm1298, %v1300, %v1296
    %v1302 = vmul.f32 1.0, %v1301
    %v1303 = vtanh.pop %v1283
    %1305 = vrot.lane.b32.xlu0 %v1265, 32
    %v1306 = vpop.permute.xlu0 %1305
    %v1308 = vmul.f32 %v1302, %v1306
    %1310 = vrot.lane.b32.xlu0 %v1303, 64
    %v1311 = vpop.permute.xlu0 %1310
    %v1313 = vmul.f32 %v1302, %v1311
    %1315 = vrot.lane.b32.xlu0 %v1313, 32
    %v1316 = vpop.permute.xlu0 %1315
    %v1318 = vadd.f32 %v1308, %v1316
    %v1319 = vtanh.pop %v1318
    %1321 = vrot.lane.b32.xlu0 %v1319, 64
    %v1322 = vpop.permute.xlu0 %1321
    %v1324 = vmul.f32 %v1302, %v1322
    %1326 = vrot.lane.b32.xlu0 %v1324, 32
    %v1327 = vpop.permute.xlu0 %1326
    %1329 = vst.msk [vmem:[%s186] sm:$0xff] %vm86, %v1327
    %1331 = vrot.lane.b32.xlu0 %v1318, 96
    %v1332 = vpop.permute.xlu0 %1331
    %1334 = vst.msk [vmem:[%s188] sm:$0xff] %vm86, %v1332
    %1335 = vrot.lane.b32.xlu0 %v1324, 64
    %v1336 = vpop.permute.xlu0 %1335
    %1338 = vst.msk [vmem:[#allocation12] sm:$0xff] %vm275, %v1336
    %v1339 = vld [vmem:[#allocation2] sm:$0xff]
    %v1340 = vld [vmem:[#allocation2 + $0x8] sm:$0xff]
    %1341 = vst.msk [vmem:[#allocation13] sm:$0xff] %vm86, %v1339
    %1342 = vst.msk [vmem:[#allocation13 + $0x8] sm:$0xff] %vm86, %v1340
    %v1343 = vld [vmem:[#allocation3] sm:$0xff]
    %v1344 = vld [vmem:[#allocation3 + $0x8] sm:$0xff]
    %1345 = vst.msk [vmem:[#allocation15] sm:$0xff] %vm86, %v1343
    %1346 = vst.msk [vmem:[#allocation15 + $0x8] sm:$0xff] %vm86, %v1344
    // Predicated region
    $region34: #{tpu_custom_call.1} parent=1 // pred_check
      _
    $region35: #{tpu_custom_call.1} parent=1 // pred_check_branch
      %1348 = sbr.rel (0) target = $region37
    $region36: #{tpu_custom_call.1} parent=1 // pred_region
      %1350 = vsyncadd [#allocation6], 0
      %s1351 = sshll.u32 [#allocation12], 4
      %s1352 = int_to_ptr.vmem [resolvable:$true] %s1351
      %s1353 = sshll.u32 %s4, 4
      %s1354 = int_to_ptr.hbm [resolvable:$true] %s1353
      %1359 = dma.vmem_to_hbm [thread:$0]  %s1352, 1024, %s1354, [#allocation6], 128, 128, 8
    $region37: #{tpu_custom_call.1} parent=1 // pred_fallthru
      _
    // Predicated region
    $region38: #{tpu_custom_call.1} parent=1 // pred_check
      _
    $region39: #{tpu_custom_call.1} parent=1 // pred_check_branch
      %1361 = sbr.rel (0) target = $region41
    $region40: #{tpu_custom_call.1} parent=1 // pred_region
      %1363 = vsyncadd [#allocation14], 0
      %s1364 = sshll.u32 [#allocation13], 4
      %s1365 = int_to_ptr.vmem [resolvable:$true] %s1364
      %s1366 = sshll.u32 %s5, 4
      %s1367 = int_to_ptr.hbm [resolvable:$true] %s1366
      %1372 = dma.vmem_to_hbm [thread:$0]  %s1365, 256, %s1367, [#allocation14], 128, 128, 8
    $region41: #{tpu_custom_call.1} parent=1 // pred_fallthru
      _
    // Predicated region
    $region42: #{tpu_custom_call.1} parent=1 // pred_check
      _
    $region43: #{tpu_custom_call.1} parent=1 // pred_check_branch
      %1374 = sbr.rel (0) target = $region45
    $region44: #{tpu_custom_call.1} parent=1 // pred_region
      %1376 = vsyncadd [#allocation14], 0
      %s1377 = sshll.u32 [#allocation15], 4
      %s1378 = int_to_ptr.vmem [resolvable:$true] %s1377
      %s1379 = sshll.u32 %s6, 4
      %s1380 = int_to_ptr.hbm [resolvable:$true] %s1379
      %1385 = dma.vmem_to_hbm [thread:$0]  %s1378, 256, %s1380, [#allocation14], 128, 128, 8
    $region45: #{tpu_custom_call.1} parent=1 // pred_fallthru
      _
    // Predicated region
    $region46: #{tpu_custom_call.1} parent=1 // pred_check
      _
    $region47: #{tpu_custom_call.1} parent=1 // pred_check_branch
      %1387 = sbr.rel (0) target = $region49
    $region48: #{tpu_custom_call.1} parent=1 // pred_region
      %1389 = dma.done [#allocation6], 1024
    $region49: #{tpu_custom_call.1} parent=1 // pred_fallthru
      _
    // Predicated region
    $region50: #{tpu_custom_call.1} parent=1 // pred_check
      _
    $region51: #{tpu_custom_call.1} parent=1 // pred_check_branch
      %1391 = sbr.rel (0) target = $region53
    $region52: #{tpu_custom_call.1} parent=1 // pred_region
      %1393 = dma.done [#allocation14], 256
    $region53: #{tpu_custom_call.1} parent=1 // pred_fallthru
      _
    // Predicated region
    $region54: #{tpu_custom_call.1} parent=1 // pred_check
      _
    $region55: #{tpu_custom_call.1} parent=1 // pred_check_branch
      %1395 = sbr.rel (0) target = $region57
    $region56: #{tpu_custom_call.1} parent=1 // pred_region
      %1397 = dma.done [#allocation14], 256
    $region57: #{tpu_custom_call.1} parent=1 // pred_fallthru
      _
    %1398 = vsyncpa [#allocation5], 1
    %1399 = vsyncpa [#allocation8], 1
    %1400 = vsyncpa [#allocation11], 1
    %1401 = vsyncpa [#allocation6], 1
    %1402 = vsyncpa [#allocation14], 1

</llo_original>
